<compile_context>
chip_gen: v6e
topology: v6e:2x2x1
jax: 0.10.0
libtpu: 0.0.40
codegen_flags: <defaults>
</compile_context>

<pallas_src>
import functools
import math

import jax
import jax.numpy as jnp
from jax import lax
from jax.experimental import pallas as pl
from jax.experimental.pallas import tpu as pltpu


def _round_up(x, m):
    return (x + m - 1) // m * m


def _vmem_caps():
    """Returns (compiler vmem cap, chunk-sizing budget) in bytes, per TPU gen."""
    cap = 128 * 1024 * 1024
    try:
        info = pltpu.get_tpu_info()
        cap = int(getattr(info, "vmem_capacity_bytes", cap))
    except Exception:
        pass
    cap = max(32 * 1024 * 1024, min(cap, 128 * 1024 * 1024))
    limit = (cap * 7) // 8      # headroom for compiler-internal scratch
    budget = (cap * 9) // 16    # what the time chunk is sized against
    return int(limit), int(budget)


def _choose_time_chunk(T, B_pad, IC_pad, HC_pad, L, budget):
    """Largest TC (time steps per grid iteration) fitting the VMEM budget."""
    # Chunk-independent residency (weights / biases / hs), x2 for per-spec
    # double buffering.
    fixed = 2 * (IC_pad * HC_pad * 2
                 + max(L - 1, 0) * HC_pad * HC_pad * 2
                 + L * HC_pad * HC_pad * 2
                 + L * HC_pad * 4
                 + L * B_pad * HC_pad * 4)
    # Per-time-step bytes: double-buffered x (bf16) and out (f32) blocks, the
    # bf16 inter-layer slab, and compiler temps for the hoisted projection
    # (f32 result value + bf16 LHS copy).
    per_t = B_pad * (2 * IC_pad * 2 + 2 * HC_pad * 4 + HC_pad * 2
                     + HC_pad * 4 + max(IC_pad, HC_pad) * 2)
    avail = budget - fixed
    if avail < per_t:
        return 1
    return int(max(1, min(T, avail // per_t)))


def _rnn_chunk_kernel(L, T, TC, B_pad, unroll, *refs):
    """One time-chunk (TC steps) of the multi-layer RNN, all layers fused.

    refs (L > 1):  x, wi0, wi_rest, wh, b, out, hs, act_scr
    refs (L == 1): x, wi0, wh, b, out, hs

      x_ref    (TC*B_pad, IC_pad)      bf16  this chunk's padded input rows
      wi0_ref  (IC_pad, HC_pad)        bf16  layer-0 input weight (in, out)
      wi_rest  (L-1, HC_pad, HC_pad)   bf16  input weights, layers >= 1
      wh_ref   (L, HC_pad, HC_pad)     bf16  hidden weights (in, out)
      b_ref    (L, 1, HC_pad)          f32   folded biases (bi + bh)
      out_ref  (TC*B_pad, HC_pad)      f32   last layer's rows for this chunk
      hs_ref   (L, B_pad, HC_pad)      f32   hidden state, resident across grid
      act_scr  (TC*B_pad, HC_pad)      bf16  inter-layer activations (chunk)
    """
    if L > 1:
        (x_ref, wi0_ref, wi_rest_ref, wh_ref, b_ref,
         out_ref, hs_ref, act_scr) = refs
    else:
        x_ref, wi0_ref, wh_ref, b_ref, out_ref, hs_ref = refs
        wi_rest_ref = None
        act_scr = None

    c = pl.program_id(0)
    mxu = jnp.bfloat16

    # Zero initial hidden state (learn_init=False) before the first chunk.
    @pl.when(c == 0)
    def _():
        hs_ref[...] = jnp.zeros_like(hs_ref)

    # Number of valid steps in this chunk (only the last chunk can be ragged).
    if T % TC == 0:
        valid = None
    else:
        valid = jnp.minimum(TC, T - c * TC)

    for l in range(L):                       # static unroll over layers
        if l == 0:
            xin = x_ref[...]                 # bf16 slab
            wi = wi0_ref[...]
        else:
            xin = act_scr[...]               # previous layer's bf16 activations
            wi = wi_rest_ref[l - 1]
        dst = out_ref if l == L - 1 else act_scr

        # Hoisted input projection for the whole chunk (one big MXU matmul,
        # both biases folded in), written in place into the destination slab.
        proj = jnp.dot(xin, wi, preferred_element_type=jnp.float32) + b_ref[l]
        dst[...] = proj.astype(dst.dtype)

        wh = wh_ref[l]                       # bf16, resident for the time loop
        h0 = hs_ref[l]                       # f32 hidden carried across chunks

        def step(t, h, wh=wh, dst=dst):
            row = pl.multiple_of(t * B_pad, B_pad)      # tile-aligned offset
            xp = dst[pl.ds(row, B_pad), :].astype(jnp.float32)
            pre = xp + jnp.dot(h.astype(mxu), wh,
                               preferred_element_type=jnp.float32)
            h_new = jnp.tanh(pre)                       # f32 recurrence
            dst[pl.ds(row, B_pad), :] = h_new.astype(dst.dtype)
            if valid is not None:
                h_new = jnp.where(t < valid, h_new, h)  # freeze past seq end
            return h_new

        h_last = lax.fori_loop(0, TC, step, h0, unroll=unroll)
        hs_ref[l] = h_last


def rnn_forward(x, params):
    """x: (T, B, IC) f32. params: list of (wi_t, bi, wh_t, bh) per layer.

    Weights are stored pre-transposed as (in_features, out_features).
    Returns (out, (hs,)) with out: (T, B, HC) f32, hs: (L, B, HC) f32.
    """
    T, B, IC = x.shape
    L = len(params)
    HC = params[0][2].shape[0]

    # Batch padded to 16 sublanes when the bf16 inter-layer slab exists so
    # per-step dynamic row slices are packed-tile aligned; feature dims padded
    # to 128 lanes (dense vregs / MXU tiles). Padding sliced off at the end.
    B_pad = _round_up(B, 16 if L > 1 else 8)
    IC_pad = _round_up(IC, 128)
    HC_pad = _round_up(HC, 128)

    vmem_limit, vmem_budget = _vmem_caps()
    TC = _choose_time_chunk(T, B_pad, IC_pad, HC_pad, L, vmem_budget)
    n_chunks = -(-T // TC)
    T_grid = n_chunks * TC
    rows = TC * B_pad

    # Input: pad, flatten to a lane-dense 2D slab, ship in bf16.
    x_p = jnp.zeros((T_grid, B_pad, IC_pad), jnp.bfloat16)
    x_p = x_p.at[:T, :B, :IC].set(x.astype(jnp.bfloat16))
    x2d = x_p.reshape(T_grid * B_pad, IC_pad)

    # Weights in bf16 (MXU dtype), biases folded (bi + bh) in f32.
    wi0 = jnp.zeros((IC_pad, HC_pad), jnp.bfloat16)
    wi0 = wi0.at[:IC, :HC].set(params[0][0].astype(jnp.bfloat16))
    wh_all = jnp.zeros((L, HC_pad, HC_pad), jnp.bfloat16)
    b_all = jnp.zeros((L, 1, HC_pad), jnp.float32)
    wi_rest = (jnp.zeros((L - 1, HC_pad, HC_pad), jnp.bfloat16)
               if L > 1 else None)
    for l, (wi_t, bi, wh_t, bh) in enumerate(params):
        wh_all = wh_all.at[l, :HC, :HC].set(wh_t.astype(jnp.bfloat16))
        b_all = b_all.at[l, 0, :HC].set(bi + bh)
        if l > 0:
            wi_rest = wi_rest.at[l - 1, :HC, :HC].set(
                wi_t.astype(jnp.bfloat16))

    # Unroll by vreg pressure: each unrolled step keeps ~2 (B_pad, HC_pad)
    # f32 tiles live in the 64 x 4KiB register file.
    unroll = int(max(1, min(8, TC,
                            (64 * 4096) // max(1, 2 * B_pad * HC_pad * 4))))

    inputs = [x2d, wi0]
    in_specs = [
        pl.BlockSpec((rows, IC_pad), lambda c: (c, 0)),            # x chunk
        pl.BlockSpec((IC_pad, HC_pad), lambda c: (0, 0)),          # wi0 (resident)
    ]
    if L > 1:
        inputs.append(wi_rest)
        in_specs.append(
            pl.BlockSpec((L - 1, HC_pad, HC_pad), lambda c: (0, 0, 0)))
    inputs += [wh_all, b_all]
    in_specs += [
        pl.BlockSpec((L, HC_pad, HC_pad), lambda c: (0, 0, 0)),    # wh (resident)
        pl.BlockSpec((L, 1, HC_pad), lambda c: (0, 0, 0)),         # bias (resident)
    ]

    out_shape = (
        jax.ShapeDtypeStruct((T_grid * B_pad, HC_pad), jnp.float32),  # out
        jax.ShapeDtypeStruct((L, B_pad, HC_pad), jnp.float32),        # hs
    )
    out_specs = (
        pl.BlockSpec((rows, HC_pad), lambda c: (c, 0)),               # out chunk
        pl.BlockSpec((L, B_pad, HC_pad), lambda c: (0, 0, 0)),        # hs resident
    )

    scratch = []
    if L > 1:
        scratch.append(pltpu.VMEM((rows, HC_pad), jnp.bfloat16))      # act slab

    kernel = functools.partial(_rnn_chunk_kernel, L, T, TC, B_pad, unroll)
    out2d, hs_p = pl.pallas_call(
        kernel,
        out_shape=out_shape,
        grid=(n_chunks,),
        in_specs=in_specs,
        out_specs=out_specs,
        scratch_shapes=scratch,
        compiler_params=pltpu.CompilerParams(
            dimension_semantics=("arbitrary",),       # sequential time chunks
            vmem_limit_bytes=vmem_limit),
    )(*inputs)

    out = out2d.reshape(T_grid, B_pad, HC_pad)[:T, :B, :HC]
    hs = hs_p[:, :B, :HC]
    return out, (hs,)


def init_rnn_params(key, ic, hc, layer_num):
    """Xavier-normal weights, zero biases (matches the PyTorch __init__)."""
    params = []
    in_dims = [ic] + [hc] * (layer_num - 1)
    for d_in in in_dims:
        key, k1, k2 = jax.random.split(key, 3)
        std_i = math.sqrt(2.0 / (d_in + hc))
        std_h = math.sqrt(2.0 / (hc + hc))
        # PyTorch Linear weight is (out, in); we store its transpose (in, out).
        wi_t = (jax.random.normal(k1, (hc, d_in), jnp.float32) * std_i).T
        wh_t = (jax.random.normal(k2, (hc, hc), jnp.float32) * std_h).T
        bi = jnp.zeros((hc,), jnp.float32)
        bh = jnp.zeros((hc,), jnp.float32)
        params.append((wi_t, bi, wh_t, bh))
    return params


def _reference_forward(x, params):
    """Pure-JAX reference mimicking the kernel's bf16-at-MXU / f32 numerics."""
    f32, bf16 = jnp.float32, jnp.bfloat16

    def mm(a, w):
        return jnp.dot(a.astype(bf16), w.astype(bf16),
                       preferred_element_type=f32)

    L = len(params)
    seq = x.astype(f32)
    last = []
    for l, (wi_t, bi, wh_t, bh) in enumerate(params):
        T, B, _ = seq.shape
        hc = wh_t.shape[0]
        is_last = (l == L - 1)
        xproj = mm(seq, wi_t) + (bi + bh)                 # hoisted, f32
        if not is_last:
            xproj = xproj.astype(bf16).astype(f32)        # kernel stores bf16
        h = jnp.zeros((B, hc), f32)
        outs = []
        for t in range(T):
            h = jnp.tanh(xproj[t] + mm(h, wh_t))
            outs.append(h if is_last else h.astype(bf16).astype(f32))
        seq = jnp.stack(outs, axis=0)
        last.append(h)
    return seq, (jnp.stack(last, axis=0),)


if __name__ == "__main__":
    # Small shapes consistent with the module's (x_len, bs, ic) input.
    seq_len, bs, ic, hc, layer_num = 8, 2, 4, 32, 2

    key = jax.random.PRNGKey(0)
    key, kx = jax.random.split(key)
    x = jax.random.normal(kx, (seq_len, bs, ic), jnp.float32)
    params = init_rnn_params(key, ic, hc, layer_num)

    fwd = jax.jit(rnn_forward)
    out, (hs,) = fwd(x, params)
    out = jax.block_until_ready(out)
    hs = jax.block_until_ready(hs)

    assert out.shape == (seq_len, bs, hc)
    assert hs.shape == (layer_num, bs, hc)

    # Sanity check against a pure-JAX reference with matching MXU numerics.
    ref_out, (ref_hs,) = _reference_forward(x, params)
    err_o = float(jnp.max(jnp.abs(out - ref_out)))
    err_h = float(jnp.max(jnp.abs(hs - ref_hs)))
    assert err_o < 5e-3, err_o
    assert err_h < 5e-3, err_h

    print("KERNEL_OK")
</pallas_src>

<mosaic_0001>
module attributes {stable_mosaic.version = 11 : i64} {
  func.func @_rnn_chunk_kernel(%arg0: i32, %arg1: memref<128x128xbf16, #tpu.memory_space<vmem>>, %arg2: memref<128x128xbf16, #tpu.memory_space<vmem>>, %arg3: memref<1x128x128xbf16, #tpu.memory_space<vmem>>, %arg4: memref<2x128x128xbf16, #tpu.memory_space<vmem>>, %arg5: memref<2x1x128xf32, #tpu.memory_space<vmem>>, %arg6: memref<128x128xf32, #tpu.memory_space<vmem>>, %arg7: memref<2x16x128xf32, #tpu.memory_space<vmem>>, %arg8: memref<128x128xbf16, #tpu.memory_space<vmem>>) attributes {dimension_semantics = [#tpu.dimension_semantics<arbitrary>], iteration_bounds = array<i64: 1>, scalar_prefetch = 0 : i64, scratch_operands = 1 : i64, tpu.core_type = #tpu.core_type<tc>, window_params = [{transform_indices = @transform_0, window_bounds = array<i64: 128, 128>}, {pipeline_mode = #tpu.pipeline_mode<synchronous>, transform_indices = @transform_1, window_bounds = array<i64: 128, 128>}, {pipeline_mode = #tpu.pipeline_mode<synchronous>, transform_indices = @transform_2, window_bounds = array<i64: 1, 128, 128>}, {pipeline_mode = #tpu.pipeline_mode<synchronous>, transform_indices = @transform_3, window_bounds = array<i64: 2, 128, 128>}, {pipeline_mode = #tpu.pipeline_mode<synchronous>, transform_indices = @transform_4, window_bounds = array<i64: 2, 1, 128>}, {transform_indices = @transform_5, window_bounds = array<i64: 128, 128>}, {pipeline_mode = #tpu.pipeline_mode<synchronous>, transform_indices = @transform_6, window_bounds = array<i64: 2, 16, 128>}]} {
    %c0_i32 = arith.constant 0 : i32
    %0 = arith.cmpi eq, %arg0, %c0_i32 : i32
    %1 = arith.extui %0 : i1 to i32
    %c0_i32_0 = arith.constant 0 : i32
    %2 = arith.cmpi ne, %1, %c0_i32_0 : i32
    scf.if %2 {
      %cst_110 = arith.constant 0.000000e+00 : f32
      %211 = vector.broadcast %cst_110 : f32 to vector<2x16x128xf32>
      %c0_111 = arith.constant 0 : index
      %c0_112 = arith.constant 0 : index
      %c0_113 = arith.constant 0 : index
      %212 = vector.load %arg7[%c0_111, %c0_112, %c0_113] : memref<2x16x128xf32, #tpu.memory_space<vmem>>, vector<2x16x128xf32>
      tpu.vector_store %arg7[%c0_111, %c0_112, %c0_113], %211 {strides = array<i32>} : memref<2x16x128xf32, #tpu.memory_space<vmem>>, vector<2x16x128xf32>,
    } else {
    }
    %c0 = arith.constant 0 : index
    %c0_1 = arith.constant 0 : index
    %3 = vector.load %arg1[%c0, %c0_1] : memref<128x128xbf16, #tpu.memory_space<vmem>>, vector<128x128xbf16>
    %c0_2 = arith.constant 0 : index
    %c0_3 = arith.constant 0 : index
    %4 = vector.load %arg2[%c0_2, %c0_3] : memref<128x128xbf16, #tpu.memory_space<vmem>>, vector<128x128xbf16>
    %cst = arith.constant dense<0.000000e+00> : vector<128x128xf32>
    %5 = tpu.matmul %3, %4, %cst {dimension_numbers = #tpu.dot_dimension_numbers<[1], [0], [0], [1], [0, 0, 1, 1], [], []>} : vector<128x128xbf16>, vector<128x128xbf16>, vector<128x128xf32> -> vector<128x128xf32>
    %c0_4 = arith.constant 0 : index
    %c0_5 = arith.constant 0 : index
    %c0_6 = arith.constant 0 : index
    %6 = vector.load %arg5[%c0_4, %c0_5, %c0_6] : memref<2x1x128xf32, #tpu.memory_space<vmem>>, vector<1x1x128xf32>
    %7 = vector.shape_cast %6 : vector<1x1x128xf32> to vector<1x128xf32>
    %8 = vector.broadcast %7 : vector<1x128xf32> to vector<128x128xf32>
    %9 = arith.addf %5, %8 : vector<128x128xf32>
    %10 = arith.truncf %9 : vector<128x128xf32> to vector<128x128xbf16>
    %c0_7 = arith.constant 0 : index
    %c0_8 = arith.constant 0 : index
    %11 = vector.load %arg8[%c0_7, %c0_8] : memref<128x128xbf16, #tpu.memory_space<vmem>>, vector<128x128xbf16>
    tpu.vector_store %arg8[%c0_7, %c0_8], %10 {strides = array<i32>} : memref<128x128xbf16, #tpu.memory_space<vmem>>, vector<128x128xbf16>,
    %c0_9 = arith.constant 0 : index
    %c0_10 = arith.constant 0 : index
    %c0_11 = arith.constant 0 : index
    %12 = vector.load %arg4[%c0_9, %c0_10, %c0_11] : memref<2x128x128xbf16, #tpu.memory_space<vmem>>, vector<1x128x128xbf16>
    %13 = vector.shape_cast %12 : vector<1x128x128xbf16> to vector<128x128xbf16>
    %c0_12 = arith.constant 0 : index
    %c0_13 = arith.constant 0 : index
    %c0_14 = arith.constant 0 : index
    %14 = vector.load %arg7[%c0_12, %c0_13, %c0_14] : memref<2x16x128xf32, #tpu.memory_space<vmem>>, vector<1x16x128xf32>
    %15 = vector.shape_cast %14 : vector<1x16x128xf32> to vector<16x128xf32>
    %c0_i32_15 = arith.constant 0 : i32
    %c16_i32 = arith.constant 16 : i32
    %16 = arith.muli %c0_i32_15, %c16_i32 : i32
    %17 = tpu.assume_multiple %16, 16 : i32
    %18 = arith.index_cast %17 : i32 to index
    %c0_16 = arith.constant 0 : index
    %19 = vector.load %arg8[%18, %c0_16] : memref<128x128xbf16, #tpu.memory_space<vmem>>, vector<16x128xbf16>
    %20 = arith.extf %19 : vector<16x128xbf16> to vector<16x128xf32>
    %21 = arith.truncf %15 : vector<16x128xf32> to vector<16x128xbf16>
    %cst_17 = arith.constant dense<0.000000e+00> : vector<16x128xf32>
    %22 = tpu.matmul %21, %13, %cst_17 {dimension_numbers = #tpu.dot_dimension_numbers<[1], [0], [0], [1], [0, 0, 1, 1], [], []>} : vector<16x128xbf16>, vector<128x128xbf16>, vector<16x128xf32> -> vector<16x128xf32>
    %23 = arith.addf %20, %22 : vector<16x128xf32>
    %24 = math.tanh %23 : vector<16x128xf32>
    %25 = arith.truncf %24 : vector<16x128xf32> to vector<16x128xbf16>
    %26 = arith.index_cast %17 : i32 to index
    %c0_18 = arith.constant 0 : index
    %27 = vector.load %arg8[%26, %c0_18] : memref<128x128xbf16, #tpu.memory_space<vmem>>, vector<16x128xbf16>
    tpu.vector_store %arg8[%26, %c0_18], %25 {strides = array<i32>} : memref<128x128xbf16, #tpu.memory_space<vmem>>, vector<16x128xbf16>,
    %c1_i32 = arith.constant 1 : i32
    %c16_i32_19 = arith.constant 16 : i32
    %28 = arith.muli %c1_i32, %c16_i32_19 : i32
    %29 = tpu.assume_multiple %28, 16 : i32
    %30 = arith.index_cast %29 : i32 to index
    %c0_20 = arith.constant 0 : index
    %31 = vector.load %arg8[%30, %c0_20] : memref<128x128xbf16, #tpu.memory_space<vmem>>, vector<16x128xbf16>
    %32 = arith.extf %31 : vector<16x128xbf16> to vector<16x128xf32>
    %33 = arith.truncf %24 : vector<16x128xf32> to vector<16x128xbf16>
    %cst_21 = arith.constant dense<0.000000e+00> : vector<16x128xf32>
    %34 = tpu.matmul %33, %13, %cst_21 {dimension_numbers = #tpu.dot_dimension_numbers<[1], [0], [0], [1], [0, 0, 1, 1], [], []>} : vector<16x128xbf16>, vector<128x128xbf16>, vector<16x128xf32> -> vector<16x128xf32>
    %35 = arith.addf %32, %34 : vector<16x128xf32>
    %36 = math.tanh %35 : vector<16x128xf32>
    %37 = arith.truncf %36 : vector<16x128xf32> to vector<16x128xbf16>
    %38 = arith.index_cast %29 : i32 to index
    %c0_22 = arith.constant 0 : index
    %39 = vector.load %arg8[%38, %c0_22] : memref<128x128xbf16, #tpu.memory_space<vmem>>, vector<16x128xbf16>
    tpu.vector_store %arg8[%38, %c0_22], %37 {strides = array<i32>} : memref<128x128xbf16, #tpu.memory_space<vmem>>, vector<16x128xbf16>,
    %c2_i32 = arith.constant 2 : i32
    %c16_i32_23 = arith.constant 16 : i32
    %40 = arith.muli %c2_i32, %c16_i32_23 : i32
    %41 = tpu.assume_multiple %40, 16 : i32
    %42 = arith.index_cast %41 : i32 to index
    %c0_24 = arith.constant 0 : index
    %43 = vector.load %arg8[%42, %c0_24] : memref<128x128xbf16, #tpu.memory_space<vmem>>, vector<16x128xbf16>
    %44 = arith.extf %43 : vector<16x128xbf16> to vector<16x128xf32>
    %45 = arith.truncf %36 : vector<16x128xf32> to vector<16x128xbf16>
    %cst_25 = arith.constant dense<0.000000e+00> : vector<16x128xf32>
    %46 = tpu.matmul %45, %13, %cst_25 {dimension_numbers = #tpu.dot_dimension_numbers<[1], [0], [0], [1], [0, 0, 1, 1], [], []>} : vector<16x128xbf16>, vector<128x128xbf16>, vector<16x128xf32> -> vector<16x128xf32>
    %47 = arith.addf %44, %46 : vector<16x128xf32>
    %48 = math.tanh %47 : vector<16x128xf32>
    %49 = arith.truncf %48 : vector<16x128xf32> to vector<16x128xbf16>
    %50 = arith.index_cast %41 : i32 to index
    %c0_26 = arith.constant 0 : index
    %51 = vector.load %arg8[%50, %c0_26] : memref<128x128xbf16, #tpu.memory_space<vmem>>, vector<16x128xbf16>
    tpu.vector_store %arg8[%50, %c0_26], %49 {strides = array<i32>} : memref<128x128xbf16, #tpu.memory_space<vmem>>, vector<16x128xbf16>,
    %c3_i32 = arith.constant 3 : i32
    %c16_i32_27 = arith.constant 16 : i32
    %52 = arith.muli %c3_i32, %c16_i32_27 : i32
    %53 = tpu.assume_multiple %52, 16 : i32
    %54 = arith.index_cast %53 : i32 to index
    %c0_28 = arith.constant 0 : index
    %55 = vector.load %arg8[%54, %c0_28] : memref<128x128xbf16, #tpu.memory_space<vmem>>, vector<16x128xbf16>
    %56 = arith.extf %55 : vector<16x128xbf16> to vector<16x128xf32>
    %57 = arith.truncf %48 : vector<16x128xf32> to vector<16x128xbf16>
    %cst_29 = arith.constant dense<0.000000e+00> : vector<16x128xf32>
    %58 = tpu.matmul %57, %13, %cst_29 {dimension_numbers = #tpu.dot_dimension_numbers<[1], [0], [0], [1], [0, 0, 1, 1], [], []>} : vector<16x128xbf16>, vector<128x128xbf16>, vector<16x128xf32> -> vector<16x128xf32>
    %59 = arith.addf %56, %58 : vector<16x128xf32>
    %60 = math.tanh %59 : vector<16x128xf32>
    %61 = arith.truncf %60 : vector<16x128xf32> to vector<16x128xbf16>
    %62 = arith.index_cast %53 : i32 to index
    %c0_30 = arith.constant 0 : index
    %63 = vector.load %arg8[%62, %c0_30] : memref<128x128xbf16, #tpu.memory_space<vmem>>, vector<16x128xbf16>
    tpu.vector_store %arg8[%62, %c0_30], %61 {strides = array<i32>} : memref<128x128xbf16, #tpu.memory_space<vmem>>, vector<16x128xbf16>,
    %c4_i32 = arith.constant 4 : i32
    %c16_i32_31 = arith.constant 16 : i32
    %64 = arith.muli %c4_i32, %c16_i32_31 : i32
    %65 = tpu.assume_multiple %64, 16 : i32
    %66 = arith.index_cast %65 : i32 to index
    %c0_32 = arith.constant 0 : index
    %67 = vector.load %arg8[%66, %c0_32] : memref<128x128xbf16, #tpu.memory_space<vmem>>, vector<16x128xbf16>
    %68 = arith.extf %67 : vector<16x128xbf16> to vector<16x128xf32>
    %69 = arith.truncf %60 : vector<16x128xf32> to vector<16x128xbf16>
    %cst_33 = arith.constant dense<0.000000e+00> : vector<16x128xf32>
    %70 = tpu.matmul %69, %13, %cst_33 {dimension_numbers = #tpu.dot_dimension_numbers<[1], [0], [0], [1], [0, 0, 1, 1], [], []>} : vector<16x128xbf16>, vector<128x128xbf16>, vector<16x128xf32> -> vector<16x128xf32>
    %71 = arith.addf %68, %70 : vector<16x128xf32>
    %72 = math.tanh %71 : vector<16x128xf32>
    %73 = arith.truncf %72 : vector<16x128xf32> to vector<16x128xbf16>
    %74 = arith.index_cast %65 : i32 to index
    %c0_34 = arith.constant 0 : index
    %75 = vector.load %arg8[%74, %c0_34] : memref<128x128xbf16, #tpu.memory_space<vmem>>, vector<16x128xbf16>
    tpu.vector_store %arg8[%74, %c0_34], %73 {strides = array<i32>} : memref<128x128xbf16, #tpu.memory_space<vmem>>, vector<16x128xbf16>,
    %c5_i32 = arith.constant 5 : i32
    %c16_i32_35 = arith.constant 16 : i32
    %76 = arith.muli %c5_i32, %c16_i32_35 : i32
    %77 = tpu.assume_multiple %76, 16 : i32
    %78 = arith.index_cast %77 : i32 to index
    %c0_36 = arith.constant 0 : index
    %79 = vector.load %arg8[%78, %c0_36] : memref<128x128xbf16, #tpu.memory_space<vmem>>, vector<16x128xbf16>
    %80 = arith.extf %79 : vector<16x128xbf16> to vector<16x128xf32>
    %81 = arith.truncf %72 : vector<16x128xf32> to vector<16x128xbf16>
    %cst_37 = arith.constant dense<0.000000e+00> : vector<16x128xf32>
    %82 = tpu.matmul %81, %13, %cst_37 {dimension_numbers = #tpu.dot_dimension_numbers<[1], [0], [0], [1], [0, 0, 1, 1], [], []>} : vector<16x128xbf16>, vector<128x128xbf16>, vector<16x128xf32> -> vector<16x128xf32>
    %83 = arith.addf %80, %82 : vector<16x128xf32>
    %84 = math.tanh %83 : vector<16x128xf32>
    %85 = arith.truncf %84 : vector<16x128xf32> to vector<16x128xbf16>
    %86 = arith.index_cast %77 : i32 to index
    %c0_38 = arith.constant 0 : index
    %87 = vector.load %arg8[%86, %c0_38] : memref<128x128xbf16, #tpu.memory_space<vmem>>, vector<16x128xbf16>
    tpu.vector_store %arg8[%86, %c0_38], %85 {strides = array<i32>} : memref<128x128xbf16, #tpu.memory_space<vmem>>, vector<16x128xbf16>,
    %c6_i32 = arith.constant 6 : i32
    %c16_i32_39 = arith.constant 16 : i32
    %88 = arith.muli %c6_i32, %c16_i32_39 : i32
    %89 = tpu.assume_multiple %88, 16 : i32
    %90 = arith.index_cast %89 : i32 to index
    %c0_40 = arith.constant 0 : index
    %91 = vector.load %arg8[%90, %c0_40] : memref<128x128xbf16, #tpu.memory_space<vmem>>, vector<16x128xbf16>
    %92 = arith.extf %91 : vector<16x128xbf16> to vector<16x128xf32>
    %93 = arith.truncf %84 : vector<16x128xf32> to vector<16x128xbf16>
    %cst_41 = arith.constant dense<0.000000e+00> : vector<16x128xf32>
    %94 = tpu.matmul %93, %13, %cst_41 {dimension_numbers = #tpu.dot_dimension_numbers<[1], [0], [0], [1], [0, 0, 1, 1], [], []>} : vector<16x128xbf16>, vector<128x128xbf16>, vector<16x128xf32> -> vector<16x128xf32>
    %95 = arith.addf %92, %94 : vector<16x128xf32>
    %96 = math.tanh %95 : vector<16x128xf32>
    %97 = arith.truncf %96 : vector<16x128xf32> to vector<16x128xbf16>
    %98 = arith.index_cast %89 : i32 to index
    %c0_42 = arith.constant 0 : index
    %99 = vector.load %arg8[%98, %c0_42] : memref<128x128xbf16, #tpu.memory_space<vmem>>, vector<16x128xbf16>
    tpu.vector_store %arg8[%98, %c0_42], %97 {strides = array<i32>} : memref<128x128xbf16, #tpu.memory_space<vmem>>, vector<16x128xbf16>,
    %c7_i32 = arith.constant 7 : i32
    %c16_i32_43 = arith.constant 16 : i32
    %100 = arith.muli %c7_i32, %c16_i32_43 : i32
    %101 = tpu.assume_multiple %100, 16 : i32
    %102 = arith.index_cast %101 : i32 to index
    %c0_44 = arith.constant 0 : index
    %103 = vector.load %arg8[%102, %c0_44] : memref<128x128xbf16, #tpu.memory_space<vmem>>, vector<16x128xbf16>
    %104 = arith.extf %103 : vector<16x128xbf16> to vector<16x128xf32>
    %105 = arith.truncf %96 : vector<16x128xf32> to vector<16x128xbf16>
    %cst_45 = arith.constant dense<0.000000e+00> : vector<16x128xf32>
    %106 = tpu.matmul %105, %13, %cst_45 {dimension_numbers = #tpu.dot_dimension_numbers<[1], [0], [0], [1], [0, 0, 1, 1], [], []>} : vector<16x128xbf16>, vector<128x128xbf16>, vector<16x128xf32> -> vector<16x128xf32>
    %107 = arith.addf %104, %106 : vector<16x128xf32>
    %108 = math.tanh %107 : vector<16x128xf32>
    %109 = arith.truncf %108 : vector<16x128xf32> to vector<16x128xbf16>
    %110 = arith.index_cast %101 : i32 to index
    %c0_46 = arith.constant 0 : index
    %111 = vector.load %arg8[%110, %c0_46] : memref<128x128xbf16, #tpu.memory_space<vmem>>, vector<16x128xbf16>
    tpu.vector_store %arg8[%110, %c0_46], %109 {strides = array<i32>} : memref<128x128xbf16, #tpu.memory_space<vmem>>, vector<16x128xbf16>,
    %c8_i32 = arith.constant 8 : i32
    %c0_47 = arith.constant 0 : index
    %c0_48 = arith.constant 0 : index
    %c0_49 = arith.constant 0 : index
    %112 = vector.load %arg7[%c0_47, %c0_48, %c0_49] : memref<2x16x128xf32, #tpu.memory_space<vmem>>, vector<1x16x128xf32>
    %113 = vector.shape_cast %112 : vector<1x16x128xf32> to vector<16x128xf32>
    %114 = vector.shape_cast %108 : vector<16x128xf32> to vector<1x16x128xf32>
    tpu.vector_store %arg7[%c0_47, %c0_48, %c0_49], %114 {strides = array<i32>} : memref<2x16x128xf32, #tpu.memory_space<vmem>>, vector<1x16x128xf32>,
    %c0_50 = arith.constant 0 : index
    %c0_51 = arith.constant 0 : index
    %115 = vector.load %arg8[%c0_50, %c0_51] : memref<128x128xbf16, #tpu.memory_space<vmem>>, vector<128x128xbf16>
    %c0_52 = arith.constant 0 : index
    %c0_53 = arith.constant 0 : index
    %c0_54 = arith.constant 0 : index
    %116 = vector.load %arg3[%c0_52, %c0_53, %c0_54] : memref<1x128x128xbf16, #tpu.memory_space<vmem>>, vector<1x128x128xbf16>
    %117 = vector.shape_cast %116 : vector<1x128x128xbf16> to vector<128x128xbf16>
    %cst_55 = arith.constant dense<0.000000e+00> : vector<128x128xf32>
    %118 = tpu.matmul %115, %117, %cst_55 {dimension_numbers = #tpu.dot_dimension_numbers<[1], [0], [0], [1], [0, 0, 1, 1], [], []>} : vector<128x128xbf16>, vector<128x128xbf16>, vector<128x128xf32> -> vector<128x128xf32>
    %c1 = arith.constant 1 : index
    %c0_56 = arith.constant 0 : index
    %c0_57 = arith.constant 0 : index
    %119 = vector.load %arg5[%c1, %c0_56, %c0_57] : memref<2x1x128xf32, #tpu.memory_space<vmem>>, vector<1x1x128xf32>
    %120 = vector.shape_cast %119 : vector<1x1x128xf32> to vector<1x128xf32>
    %121 = vector.broadcast %120 : vector<1x128xf32> to vector<128x128xf32>
    %122 = arith.addf %118, %121 : vector<128x128xf32>
    %c0_58 = arith.constant 0 : index
    %c0_59 = arith.constant 0 : index
    %123 = vector.load %arg6[%c0_58, %c0_59] : memref<128x128xf32, #tpu.memory_space<vmem>>, vector<128x128xf32>
    tpu.vector_store %arg6[%c0_58, %c0_59], %122 {strides = array<i32>} : memref<128x128xf32, #tpu.memory_space<vmem>>, vector<128x128xf32>,
    %c1_60 = arith.constant 1 : index
    %c0_61 = arith.constant 0 : index
    %c0_62 = arith.constant 0 : index
    %124 = vector.load %arg4[%c1_60, %c0_61, %c0_62] : memref<2x128x128xbf16, #tpu.memory_space<vmem>>, vector<1x128x128xbf16>
    %125 = vector.shape_cast %124 : vector<1x128x128xbf16> to vector<128x128xbf16>
    %c1_63 = arith.constant 1 : index
    %c0_64 = arith.constant 0 : index
    %c0_65 = arith.constant 0 : index
    %126 = vector.load %arg7[%c1_63, %c0_64, %c0_65] : memref<2x16x128xf32, #tpu.memory_space<vmem>>, vector<1x16x128xf32>
    %127 = vector.shape_cast %126 : vector<1x16x128xf32> to vector<16x128xf32>
    %c0_i32_66 = arith.constant 0 : i32
    %c16_i32_67 = arith.constant 16 : i32
    %128 = arith.muli %c0_i32_66, %c16_i32_67 : i32
    %129 = tpu.assume_multiple %128, 16 : i32
    %130 = arith.index_cast %129 : i32 to index
    %c0_68 = arith.constant 0 : index
    %131 = vector.load %arg6[%130, %c0_68] : memref<128x128xf32, #tpu.memory_space<vmem>>, vector<16x128xf32>
    %132 = arith.truncf %127 : vector<16x128xf32> to vector<16x128xbf16>
    %cst_69 = arith.constant dense<0.000000e+00> : vector<16x128xf32>
    %133 = tpu.matmul %132, %125, %cst_69 {dimension_numbers = #tpu.dot_dimension_numbers<[1], [0], [0], [1], [0, 0, 1, 1], [], []>} : vector<16x128xbf16>, vector<128x128xbf16>, vector<16x128xf32> -> vector<16x128xf32>
    %134 = arith.addf %131, %133 : vector<16x128xf32>
    %135 = math.tanh %134 : vector<16x128xf32>
    %136 = arith.index_cast %129 : i32 to index
    %c0_70 = arith.constant 0 : index
    %137 = vector.load %arg6[%136, %c0_70] : memref<128x128xf32, #tpu.memory_space<vmem>>, vector<16x128xf32>
    tpu.vector_store %arg6[%136, %c0_70], %135 {strides = array<i32>} : memref<128x128xf32, #tpu.memory_space<vmem>>, vector<16x128xf32>,
    %c1_i32_71 = arith.constant 1 : i32
    %c16_i32_72 = arith.constant 16 : i32
    %138 = arith.muli %c1_i32_71, %c16_i32_72 : i32
    %139 = tpu.assume_multiple %138, 16 : i32
    %140 = arith.index_cast %139 : i32 to index
    %c0_73 = arith.constant 0 : index
    %141 = vector.load %arg6[%140, %c0_73] : memref<128x128xf32, #tpu.memory_space<vmem>>, vector<16x128xf32>
    %142 = arith.truncf %135 : vector<16x128xf32> to vector<16x128xbf16>
    %cst_74 = arith.constant dense<0.000000e+00> : vector<16x128xf32>
    %143 = tpu.matmul %142, %125, %cst_74 {dimension_numbers = #tpu.dot_dimension_numbers<[1], [0], [0], [1], [0, 0, 1, 1], [], []>} : vector<16x128xbf16>, vector<128x128xbf16>, vector<16x128xf32> -> vector<16x128xf32>
    %144 = arith.addf %141, %143 : vector<16x128xf32>
    %145 = math.tanh %144 : vector<16x128xf32>
    %146 = arith.index_cast %139 : i32 to index
    %c0_75 = arith.constant 0 : index
    %147 = vector.load %arg6[%146, %c0_75] : memref<128x128xf32, #tpu.memory_space<vmem>>, vector<16x128xf32>
    tpu.vector_store %arg6[%146, %c0_75], %145 {strides = array<i32>} : memref<128x128xf32, #tpu.memory_space<vmem>>, vector<16x128xf32>,
    %c2_i32_76 = arith.constant 2 : i32
    %c16_i32_77 = arith.constant 16 : i32
    %148 = arith.muli %c2_i32_76, %c16_i32_77 : i32
    %149 = tpu.assume_multiple %148, 16 : i32
    %150 = arith.index_cast %149 : i32 to index
    %c0_78 = arith.constant 0 : index
    %151 = vector.load %arg6[%150, %c0_78] : memref<128x128xf32, #tpu.memory_space<vmem>>, vector<16x128xf32>
    %152 = arith.truncf %145 : vector<16x128xf32> to vector<16x128xbf16>
    %cst_79 = arith.constant dense<0.000000e+00> : vector<16x128xf32>
    %153 = tpu.matmul %152, %125, %cst_79 {dimension_numbers = #tpu.dot_dimension_numbers<[1], [0], [0], [1], [0, 0, 1, 1], [], []>} : vector<16x128xbf16>, vector<128x128xbf16>, vector<16x128xf32> -> vector<16x128xf32>
    %154 = arith.addf %151, %153 : vector<16x128xf32>
    %155 = math.tanh %154 : vector<16x128xf32>
    %156 = arith.index_cast %149 : i32 to index
    %c0_80 = arith.constant 0 : index
    %157 = vector.load %arg6[%156, %c0_80] : memref<128x128xf32, #tpu.memory_space<vmem>>, vector<16x128xf32>
    tpu.vector_store %arg6[%156, %c0_80], %155 {strides = array<i32>} : memref<128x128xf32, #tpu.memory_space<vmem>>, vector<16x128xf32>,
    %c3_i32_81 = arith.constant 3 : i32
    %c16_i32_82 = arith.constant 16 : i32
    %158 = arith.muli %c3_i32_81, %c16_i32_82 : i32
    %159 = tpu.assume_multiple %158, 16 : i32
    %160 = arith.index_cast %159 : i32 to index
    %c0_83 = arith.constant 0 : index
    %161 = vector.load %arg6[%160, %c0_83] : memref<128x128xf32, #tpu.memory_space<vmem>>, vector<16x128xf32>
    %162 = arith.truncf %155 : vector<16x128xf32> to vector<16x128xbf16>
    %cst_84 = arith.constant dense<0.000000e+00> : vector<16x128xf32>
    %163 = tpu.matmul %162, %125, %cst_84 {dimension_numbers = #tpu.dot_dimension_numbers<[1], [0], [0], [1], [0, 0, 1, 1], [], []>} : vector<16x128xbf16>, vector<128x128xbf16>, vector<16x128xf32> -> vector<16x128xf32>
    %164 = arith.addf %161, %163 : vector<16x128xf32>
    %165 = math.tanh %164 : vector<16x128xf32>
    %166 = arith.index_cast %159 : i32 to index
    %c0_85 = arith.constant 0 : index
    %167 = vector.load %arg6[%166, %c0_85] : memref<128x128xf32, #tpu.memory_space<vmem>>, vector<16x128xf32>
    tpu.vector_store %arg6[%166, %c0_85], %165 {strides = array<i32>} : memref<128x128xf32, #tpu.memory_space<vmem>>, vector<16x128xf32>,
    %c4_i32_86 = arith.constant 4 : i32
    %c16_i32_87 = arith.constant 16 : i32
    %168 = arith.muli %c4_i32_86, %c16_i32_87 : i32
    %169 = tpu.assume_multiple %168, 16 : i32
    %170 = arith.index_cast %169 : i32 to index
    %c0_88 = arith.constant 0 : index
    %171 = vector.load %arg6[%170, %c0_88] : memref<128x128xf32, #tpu.memory_space<vmem>>, vector<16x128xf32>
    %172 = arith.truncf %165 : vector<16x128xf32> to vector<16x128xbf16>
    %cst_89 = arith.constant dense<0.000000e+00> : vector<16x128xf32>
    %173 = tpu.matmul %172, %125, %cst_89 {dimension_numbers = #tpu.dot_dimension_numbers<[1], [0], [0], [1], [0, 0, 1, 1], [], []>} : vector<16x128xbf16>, vector<128x128xbf16>, vector<16x128xf32> -> vector<16x128xf32>
    %174 = arith.addf %171, %173 : vector<16x128xf32>
    %175 = math.tanh %174 : vector<16x128xf32>
    %176 = arith.index_cast %169 : i32 to index
    %c0_90 = arith.constant 0 : index
    %177 = vector.load %arg6[%176, %c0_90] : memref<128x128xf32, #tpu.memory_space<vmem>>, vector<16x128xf32>
    tpu.vector_store %arg6[%176, %c0_90], %175 {strides = array<i32>} : memref<128x128xf32, #tpu.memory_space<vmem>>, vector<16x128xf32>,
    %c5_i32_91 = arith.constant 5 : i32
    %c16_i32_92 = arith.constant 16 : i32
    %178 = arith.muli %c5_i32_91, %c16_i32_92 : i32
    %179 = tpu.assume_multiple %178, 16 : i32
    %180 = arith.index_cast %179 : i32 to index
    %c0_93 = arith.constant 0 : index
    %181 = vector.load %arg6[%180, %c0_93] : memref<128x128xf32, #tpu.memory_space<vmem>>, vector<16x128xf32>
    %182 = arith.truncf %175 : vector<16x128xf32> to vector<16x128xbf16>
    %cst_94 = arith.constant dense<0.000000e+00> : vector<16x128xf32>
    %183 = tpu.matmul %182, %125, %cst_94 {dimension_numbers = #tpu.dot_dimension_numbers<[1], [0], [0], [1], [0, 0, 1, 1], [], []>} : vector<16x128xbf16>, vector<128x128xbf16>, vector<16x128xf32> -> vector<16x128xf32>
    %184 = arith.addf %181, %183 : vector<16x128xf32>
    %185 = math.tanh %184 : vector<16x128xf32>
    %186 = arith.index_cast %179 : i32 to index
    %c0_95 = arith.constant 0 : index
    %187 = vector.load %arg6[%186, %c0_95] : memref<128x128xf32, #tpu.memory_space<vmem>>, vector<16x128xf32>
    tpu.vector_store %arg6[%186, %c0_95], %185 {strides = array<i32>} : memref<128x128xf32, #tpu.memory_space<vmem>>, vector<16x128xf32>,
    %c6_i32_96 = arith.constant 6 : i32
    %c16_i32_97 = arith.constant 16 : i32
    %188 = arith.muli %c6_i32_96, %c16_i32_97 : i32
    %189 = tpu.assume_multiple %188, 16 : i32
    %190 = arith.index_cast %189 : i32 to index
    %c0_98 = arith.constant 0 : index
    %191 = vector.load %arg6[%190, %c0_98] : memref<128x128xf32, #tpu.memory_space<vmem>>, vector<16x128xf32>
    %192 = arith.truncf %185 : vector<16x128xf32> to vector<16x128xbf16>
    %cst_99 = arith.constant dense<0.000000e+00> : vector<16x128xf32>
    %193 = tpu.matmul %192, %125, %cst_99 {dimension_numbers = #tpu.dot_dimension_numbers<[1], [0], [0], [1], [0, 0, 1, 1], [], []>} : vector<16x128xbf16>, vector<128x128xbf16>, vector<16x128xf32> -> vector<16x128xf32>
    %194 = arith.addf %191, %193 : vector<16x128xf32>
    %195 = math.tanh %194 : vector<16x128xf32>
    %196 = arith.index_cast %189 : i32 to index
    %c0_100 = arith.constant 0 : index
    %197 = vector.load %arg6[%196, %c0_100] : memref<128x128xf32, #tpu.memory_space<vmem>>, vector<16x128xf32>
    tpu.vector_store %arg6[%196, %c0_100], %195 {strides = array<i32>} : memref<128x128xf32, #tpu.memory_space<vmem>>, vector<16x128xf32>,
    %c7_i32_101 = arith.constant 7 : i32
    %c16_i32_102 = arith.constant 16 : i32
    %198 = arith.muli %c7_i32_101, %c16_i32_102 : i32
    %199 = tpu.assume_multiple %198, 16 : i32
    %200 = arith.index_cast %199 : i32 to index
    %c0_103 = arith.constant 0 : index
    %201 = vector.load %arg6[%200, %c0_103] : memref<128x128xf32, #tpu.memory_space<vmem>>, vector<16x128xf32>
    %202 = arith.truncf %195 : vector<16x128xf32> to vector<16x128xbf16>
    %cst_104 = arith.constant dense<0.000000e+00> : vector<16x128xf32>
    %203 = tpu.matmul %202, %125, %cst_104 {dimension_numbers = #tpu.dot_dimension_numbers<[1], [0], [0], [1], [0, 0, 1, 1], [], []>} : vector<16x128xbf16>, vector<128x128xbf16>, vector<16x128xf32> -> vector<16x128xf32>
    %204 = arith.addf %201, %203 : vector<16x128xf32>
    %205 = math.tanh %204 : vector<16x128xf32>
    %206 = arith.index_cast %199 : i32 to index
    %c0_105 = arith.constant 0 : index
    %207 = vector.load %arg6[%206, %c0_105] : memref<128x128xf32, #tpu.memory_space<vmem>>, vector<16x128xf32>
    tpu.vector_store %arg6[%206, %c0_105], %205 {strides = array<i32>} : memref<128x128xf32, #tpu.memory_space<vmem>>, vector<16x128xf32>,
    %c8_i32_106 = arith.constant 8 : i32
    %c1_107 = arith.constant 1 : index
    %c0_108 = arith.constant 0 : index
    %c0_109 = arith.constant 0 : index
    %208 = vector.load %arg7[%c1_107, %c0_108, %c0_109] : memref<2x16x128xf32, #tpu.memory_space<vmem>>, vector<1x16x128xf32>
    %209 = vector.shape_cast %208 : vector<1x16x128xf32> to vector<16x128xf32>
    %210 = vector.shape_cast %205 : vector<16x128xf32> to vector<1x16x128xf32>
    tpu.vector_store %arg7[%c1_107, %c0_108, %c0_109], %210 {strides = array<i32>} : memref<2x16x128xf32, #tpu.memory_space<vmem>>, vector<1x16x128xf32>,
    return
  }
  func.func @transform_0(%arg0: i32) -> (i32, i32) {
    %c0_i32 = arith.constant 0 : i32
    %c0_i32_0 = arith.constant 0 : i32
    return %arg0, %c0_i32 : i32, i32
  }
  func.func @transform_1(%arg0: i32) -> (i32, i32) {
    %c0_i32 = arith.constant 0 : i32
    %c0_i32_0 = arith.constant 0 : i32
    %c0_i32_1 = arith.constant 0 : i32
    return %c0_i32, %c0_i32_0 : i32, i32
  }
  func.func @transform_2(%arg0: i32) -> (i32, i32, i32) {
    %c0_i32 = arith.constant 0 : i32
    %c0_i32_0 = arith.constant 0 : i32
    %c0_i32_1 = arith.constant 0 : i32
    %c0_i32_2 = arith.constant 0 : i32
    return %c0_i32, %c0_i32_0, %c0_i32_1 : i32, i32, i32
  }
  func.func @transform_3(%arg0: i32) -> (i32, i32, i32) {
    %c0_i32 = arith.constant 0 : i32
    %c0_i32_0 = arith.constant 0 : i32
    %c0_i32_1 = arith.constant 0 : i32
    %c0_i32_2 = arith.constant 0 : i32
    return %c0_i32, %c0_i32_0, %c0_i32_1 : i32, i32, i32
  }
  func.func @transform_4(%arg0: i32) -> (i32, i32, i32) {
    %c0_i32 = arith.constant 0 : i32
    %c0_i32_0 = arith.constant 0 : i32
    %c0_i32_1 = arith.constant 0 : i32
    %c0_i32_2 = arith.constant 0 : i32
    return %c0_i32, %c0_i32_0, %c0_i32_1 : i32, i32, i32
  }
  func.func @transform_5(%arg0: i32) -> (i32, i32) {
    %c0_i32 = arith.constant 0 : i32
    %c0_i32_0 = arith.constant 0 : i32
    return %arg0, %c0_i32 : i32, i32
  }
  func.func @transform_6(%arg0: i32) -> (i32, i32, i32) {
    %c0_i32 = arith.constant 0 : i32
    %c0_i32_0 = arith.constant 0 : i32
    %c0_i32_1 = arith.constant 0 : i32
    %c0_i32_2 = arith.constant 0 : i32
    return %c0_i32, %c0_i32_0, %c0_i32_1 : i32, i32, i32
  }
}

</mosaic_0001>

<llo_original>
// kernel: rnn_forward.1
$region0: #{rnn_forward.1}
  #allocation0 [shape = 'u32[]', space=smem, size = 0x4, offset = 0x4, fixed_abs, tag = 'smem constant byte address 0x4 - core index']
  #allocation1 [shape = 'u32[144,128]{1,0:T(1,128)}', space=vmem, size = 0x12000, scoped, tag = 'internal scratch']
  #allocation2 [shape = 'bf16[128,128]{1,0:T(8,128)(2,1)}', space=vmem, size = 0x8000, scoped, tag = 'scratch operand']
  %s0 = inlined_call_operand.vmem [shape: bf16[128,128], index: 0, kind: input, shape index: {}]
  %s1 = inlined_call_operand.vmem [shape: bf16[128,128], index: 1, kind: input, shape index: {}]
  %s2 = inlined_call_operand.vmem [shape: bf16[1,128,128], index: 2, kind: input, shape index: {}]
  %s3 = inlined_call_operand.vmem [shape: bf16[2,128,128], index: 3, kind: input, shape index: {}]
  %s4 = inlined_call_operand.vmem [shape: f32[2,1,128], index: 4, kind: input, shape index: {}]
  %s5 = inlined_call_operand.vmem [shape: f32[128,128], index: 5, kind: output, shape index: {0}]
  %s6 = inlined_call_operand.vmem [shape: f32[2,16,128], index: 6, kind: output, shape index: {1}]
  %7 = xla_tuple %s5, %s6
  %s8 = sld [smem:[#allocation0]]
  $region42: #{rnn_forward.1} parent=0
    _
  %s10 = ssub.s32 1, %s8
  %s11 = scalar_select 0, %s10, %s8
  // Predicated region
  $region2: #{rnn_forward.1} parent=0 // pred_check
    _
  $region3: #{rnn_forward.1} parent=0 // pred_check_branch
    %13 = sbr.rel (0) target = $region5
  $region4: #{rnn_forward.1} parent=0 // pred_region
    _
  $region5: #{rnn_forward.1} parent=0 // pred_fallthru
    _
  // Predicated region
  $region6: #{rnn_forward.1} parent=0 // pred_check
    _
  $region7: #{rnn_forward.1} parent=0 // pred_check_branch
    %15 = sbr.rel (0) target = $region9
  $region8: #{rnn_forward.1} parent=0 // pred_region
    _
  $region9: #{rnn_forward.1} parent=0 // pred_fallthru
    _
  // Predicated region
  $region10: #{rnn_forward.1} parent=0 // pred_check
    _
  $region11: #{rnn_forward.1} parent=0 // pred_check_branch
    %17 = sbr.rel (0) target = $region13
  $region12: #{rnn_forward.1} parent=0 // pred_region
    _
  $region13: #{rnn_forward.1} parent=0 // pred_fallthru
    _
  // Predicated region
  $region14: #{rnn_forward.1} parent=0 // pred_check
    _
  $region15: #{rnn_forward.1} parent=0 // pred_check_branch
    %19 = sbr.rel (0) target = $region17
  $region16: #{rnn_forward.1} parent=0 // pred_region
    _
  $region17: #{rnn_forward.1} parent=0 // pred_fallthru
    _
  // Predicated region
  $region18: #{rnn_forward.1} parent=0 // pred_check
    _
  $region19: #{rnn_forward.1} parent=0 // pred_check_branch
    %21 = sbr.rel (0) target = $region21
  $region20: #{rnn_forward.1} parent=0 // pred_region
    _
  $region21: #{rnn_forward.1} parent=0 // pred_fallthru
    _
  %p23 = scmp.eq.s32.totalorder 0, 0
  // Predicated region
  $region22: #{rnn_forward.1} parent=0 // pred_check
    %p24 = pneg %p23
  $region23: #{rnn_forward.1} parent=0 // pred_check_branch
    %26 = sbr.rel (%p24) target = $region25
  $region24: #{rnn_forward.1} parent=0 // pred_region
    %27 = vst [vmem:[%s6] sm:$0xff] 0.0
    %28 = vst [vmem:[%s6 + $0x8] sm:$0xff] 0.0
    %29 = vst [vmem:[%s6 + $0x10] sm:$0xff] 0.0
    %30 = vst [vmem:[%s6 + $0x18] sm:$0xff] 0.0
  $region25: #{rnn_forward.1} parent=0 // pred_fallthru
    _
  %v31 = vld [vmem:[%s0] sm:$0xf]
  %v32 = vld [vmem:[%s0 + $0x4] sm:$0xf]
  %v33 = vld [vmem:[%s0 + $0x8] sm:$0xf]
  %v34 = vld [vmem:[%s0 + $0xc] sm:$0xf]
  %v35 = vld [vmem:[%s0 + $0x10] sm:$0xf]
  %v36 = vld [vmem:[%s0 + $0x14] sm:$0xf]
  %v37 = vld [vmem:[%s0 + $0x18] sm:$0xf]
  %v38 = vld [vmem:[%s0 + $0x1c] sm:$0xf]
  %v39 = vld [vmem:[%s0 + $0x20] sm:$0xf]
  %v40 = vld [vmem:[%s0 + $0x24] sm:$0xf]
  %v41 = vld [vmem:[%s0 + $0x28] sm:$0xf]
  %v42 = vld [vmem:[%s0 + $0x2c] sm:$0xf]
  %v43 = vld [vmem:[%s0 + $0x30] sm:$0xf]
  %v44 = vld [vmem:[%s0 + $0x34] sm:$0xf]
  %v45 = vld [vmem:[%s0 + $0x38] sm:$0xf]
  %v46 = vld [vmem:[%s0 + $0x3c] sm:$0xf]
  %v47 = vld [vmem:[%s1] sm:$0xf]
  %v48 = vld [vmem:[%s1 + $0x4] sm:$0xf]
  %v49 = vld [vmem:[%s1 + $0x8] sm:$0xf]
  %v50 = vld [vmem:[%s1 + $0xc] sm:$0xf]
  %v51 = vld [vmem:[%s1 + $0x10] sm:$0xf]
  %v52 = vld [vmem:[%s1 + $0x14] sm:$0xf]
  %v53 = vld [vmem:[%s1 + $0x18] sm:$0xf]
  %v54 = vld [vmem:[%s1 + $0x1c] sm:$0xf]
  %v55 = vld [vmem:[%s1 + $0x20] sm:$0xf]
  %v56 = vld [vmem:[%s1 + $0x24] sm:$0xf]
  %v57 = vld [vmem:[%s1 + $0x28] sm:$0xf]
  %v58 = vld [vmem:[%s1 + $0x2c] sm:$0xf]
  %v59 = vld [vmem:[%s1 + $0x30] sm:$0xf]
  %v60 = vld [vmem:[%s1 + $0x34] sm:$0xf]
  %v61 = vld [vmem:[%s1 + $0x38] sm:$0xf]
  %v62 = vld [vmem:[%s1 + $0x3c] sm:$0xf]
  %v63 = vld [vmem:[%s4] sm:$0x1]
  %v65 = vlaneseq
  %v66 = vshrl.u32 %v65, 7
  %v67 = vsub.s32 0, %v66
  %v68 = vrot.slane %v63, %v67
  %v86 = vunpack.c.l.b16 %v31
  %v87 = vunpack.c.l.b16 %v32
  %v88 = vunpack.c.l.b16 %v33
  %v89 = vunpack.c.l.b16 %v34
  %v90 = vunpack.c.l.b16 %v35
  %v91 = vunpack.c.l.b16 %v36
  %v92 = vunpack.c.l.b16 %v37
  %v93 = vunpack.c.l.b16 %v38
  %v94 = vunpack.c.l.b16 %v39
  %v95 = vunpack.c.l.b16 %v40
  %v96 = vunpack.c.l.b16 %v41
  %v97 = vunpack.c.l.b16 %v42
  %v98 = vunpack.c.l.b16 %v43
  %v99 = vunpack.c.l.b16 %v44
  %v100 = vunpack.c.l.b16 %v45
  %v101 = vunpack.c.l.b16 %v46
  %v102 = vpack.c.b16 %v87, %v86
  %v103 = vpack.c.b16 %v89, %v88
  %v104 = vpack.c.b16 %v91, %v90
  %v105 = vpack.c.b16 %v93, %v92
  %v106 = vpack.c.b16 %v95, %v94
  %v107 = vpack.c.b16 %v97, %v96
  %v108 = vpack.c.b16 %v99, %v98
  %v109 = vpack.c.b16 %v101, %v100
  %v134 = vunpack.c.l.b16 %v47
  %v135 = vunpack.c.l.b16 %v48
  %v136 = vunpack.c.l.b16 %v49
  %v137 = vunpack.c.l.b16 %v50
  %v138 = vunpack.c.l.b16 %v51
  %v139 = vunpack.c.l.b16 %v52
  %v140 = vunpack.c.l.b16 %v53
  %v141 = vunpack.c.l.b16 %v54
  %v142 = vunpack.c.l.b16 %v55
  %v143 = vunpack.c.l.b16 %v56
  %v144 = vunpack.c.l.b16 %v57
  %v145 = vunpack.c.l.b16 %v58
  %v146 = vunpack.c.l.b16 %v59
  %v147 = vunpack.c.l.b16 %v60
  %v148 = vunpack.c.l.b16 %v61
  %v149 = vunpack.c.l.b16 %v62
  %v150 = vpack.c.b16 %v135, %v134
  %v151 = vpack.c.b16 %v137, %v136
  %v152 = vpack.c.b16 %v139, %v138
  %v153 = vpack.c.b16 %v141, %v140
  %v154 = vpack.c.b16 %v143, %v142
  %v155 = vpack.c.b16 %v145, %v144
  %v156 = vpack.c.b16 %v147, %v146
  %v157 = vpack.c.b16 %v149, %v148
  %166 = vmatprep.subr.bf16.mxu0 0
  %167 = vmatpush1.bf16.msra.mxu0 %v157
  %168 = vmatprep.subr.bf16.mxu0 0
  %169 = vmatpush1.bf16.msra.mxu0 %v156
  %170 = vmatprep.subr.bf16.mxu0 0
  %171 = vmatpush1.bf16.msra.mxu0 %v155
  %172 = vmatprep.subr.bf16.mxu0 0
  %173 = vmatpush1.bf16.msra.mxu0 %v154
  %174 = vmatprep.subr.bf16.mxu0 0
  %175 = vmatpush1.bf16.msra.mxu0 %v153
  %176 = vmatprep.subr.bf16.mxu0 0
  %177 = vmatpush1.bf16.msra.mxu0 %v152
  %178 = vmatprep.subr.bf16.mxu0 0
  %179 = vmatpush1.bf16.msra.mxu0 %v151
  %180 = vmatprep.subr.bf16.mxu0 0
  %181 = vmatpush1.bf16.msra.mxu0 %v150
  %182 = vmatprep.subr.bf16.mxu0 0
  %183 = vmatpush2.bf16.msra.mxu0 0
  %184 = vmatprep.subr.bf16.mxu0 0
  %185 = vmatpush2.bf16.msra.mxu0 0
  %186 = vmatprep.subr.bf16.mxu0 0
  %187 = vmatpush2.bf16.msra.mxu0 0
  %188 = vmatprep.subr.bf16.mxu0 0
  %189 = vmatpush2.bf16.msra.mxu0 0
  %190 = vmatprep.subr.bf16.mxu0 0
  %191 = vmatpush2.bf16.msra.mxu0 0
  %192 = vmatprep.subr.bf16.mxu0 0
  %193 = vmatpush2.bf16.msra.mxu0 0
  %194 = vmatprep.subr.bf16.mxu0 0
  %195 = vmatpush2.bf16.msra.mxu0 0
  %196 = vmatprep.subr.bf16.mxu0 0
  %197 = vmatpush2.bf16.msra.mxu0 0
  %198 = vmatprep.mubr.bf16.mxu0 0
  %199 = vmatmul.mubr.bf16.gmra.mxu0 %v102
  %v200 = vpop.f32.mrf.mxu0
  %v201 = vadd.f32 %v68, %v200
  %v202 = vpop.f32.mrf.mxu0
  %v203 = vpop.f32.mrf.mxu0
  %v204 = vadd.f32 %v68, %v203
  %v205 = vpop.f32.mrf.mxu0
  %206 = vmatprep.mubr.bf16.mxu0 0
  %207 = vmatmul.mubr.bf16.gmra.mxu0 %v103
  %v208 = vpop.f32.mrf.mxu0
  %v209 = vadd.f32 %v68, %v208
  %v210 = vpop.f32.mrf.mxu0
  %v211 = vpop.f32.mrf.mxu0
  %v212 = vadd.f32 %v68, %v211
  %v213 = vpop.f32.mrf.mxu0
  %214 = vmatprep.mubr.bf16.mxu0 0
  %215 = vmatmul.mubr.bf16.gmra.mxu0 %v104
  %v216 = vpop.f32.mrf.mxu0
  %v217 = vadd.f32 %v68, %v216
  %v218 = vpop.f32.mrf.mxu0
  %v219 = vpop.f32.mrf.mxu0
  %v220 = vadd.f32 %v68, %v219
  %v221 = vpop.f32.mrf.mxu0
  %222 = vmatprep.mubr.bf16.mxu0 0
  %223 = vmatmul.mubr.bf16.gmra.mxu0 %v105
  %v224 = vpop.f32.mrf.mxu0
  %v225 = vadd.f32 %v68, %v224
  %v226 = vpop.f32.mrf.mxu0
  %v227 = vpop.f32.mrf.mxu0
  %v228 = vadd.f32 %v68, %v227
  %v229 = vpop.f32.mrf.mxu0
  %230 = vmatprep.mubr.bf16.mxu0 0
  %231 = vmatmul.mubr.bf16.gmra.mxu0 %v106
  %v232 = vpop.f32.mrf.mxu0
  %v233 = vadd.f32 %v68, %v232
  %v234 = vpop.f32.mrf.mxu0
  %v235 = vpop.f32.mrf.mxu0
  %v236 = vadd.f32 %v68, %v235
  %v237 = vpop.f32.mrf.mxu0
  %238 = vmatprep.mubr.bf16.mxu0 0
  %239 = vmatmul.mubr.bf16.gmra.mxu0 %v107
  %v240 = vpop.f32.mrf.mxu0
  %v241 = vadd.f32 %v68, %v240
  %v242 = vpop.f32.mrf.mxu0
  %v243 = vpop.f32.mrf.mxu0
  %v244 = vadd.f32 %v68, %v243
  %v245 = vpop.f32.mrf.mxu0
  %246 = vmatprep.mubr.bf16.mxu0 0
  %247 = vmatmul.mubr.bf16.gmra.mxu0 %v108
  %v248 = vpop.f32.mrf.mxu0
  %v249 = vadd.f32 %v68, %v248
  %v250 = vpop.f32.mrf.mxu0
  %v251 = vpop.f32.mrf.mxu0
  %v252 = vadd.f32 %v68, %v251
  %v253 = vpop.f32.mrf.mxu0
  %254 = vmatprep.mubr.bf16.mxu0 0
  %255 = vmatmul.mubr.bf16.gmra.mxu0 %v109
  %v256 = vpop.f32.mrf.mxu0
  %v257 = vadd.f32 %v68, %v256
  %v258 = vpop.f32.mrf.mxu0
  %v259 = vpop.f32.mrf.mxu0
  %v260 = vadd.f32 %v68, %v259
  %v261 = vpop.f32.mrf.mxu0
  %262 = vdwg.mxu0
  %v263 = vpack.c.bf16 %v204, %v201
  %v264 = vpack.c.bf16 %v212, %v209
  %v265 = vpack.c.bf16 %v220, %v217
  %v266 = vpack.c.bf16 %v228, %v225
  %v267 = vpack.c.bf16 %v236, %v233
  %v268 = vpack.c.bf16 %v244, %v241
  %v269 = vpack.c.bf16 %v252, %v249
  %v270 = vpack.c.bf16 %v260, %v257
  %v279 = vunpack.c.l.b16 %v263
  %v280 = vunpack.c.h.b16 %v263
  %v281 = vunpack.c.l.b16 %v264
  %v282 = vunpack.c.h.b16 %v264
  %v283 = vunpack.c.l.b16 %v265
  %v284 = vunpack.c.h.b16 %v265
  %v285 = vunpack.c.l.b16 %v266
  %v286 = vunpack.c.h.b16 %v266
  %v287 = vunpack.c.l.b16 %v267
  %v288 = vunpack.c.h.b16 %v267
  %v289 = vunpack.c.l.b16 %v268
  %v290 = vunpack.c.h.b16 %v268
  %v291 = vunpack.c.l.b16 %v269
  %v292 = vunpack.c.h.b16 %v269
  %v293 = vunpack.c.l.b16 %v270
  %v294 = vunpack.c.h.b16 %v270
  %v295 = vpack.c.b16 %v279, %v279
  %v296 = vpack.c.b16 %v280, %v280
  %v297 = vpack.c.b16 %v281, %v281
  %v298 = vpack.c.b16 %v282, %v282
  %v299 = vpack.c.b16 %v283, %v283
  %v300 = vpack.c.b16 %v284, %v284
  %v301 = vpack.c.b16 %v285, %v285
  %v302 = vpack.c.b16 %v286, %v286
  %v303 = vpack.c.b16 %v287, %v287
  %v304 = vpack.c.b16 %v288, %v288
  %v305 = vpack.c.b16 %v289, %v289
  %v306 = vpack.c.b16 %v290, %v290
  %v307 = vpack.c.b16 %v291, %v291
  %v308 = vpack.c.b16 %v292, %v292
  %v309 = vpack.c.b16 %v293, %v293
  %v310 = vpack.c.b16 %v294, %v294
  %327 = vst [vmem:[#allocation2] sm:$0xf] %v295
  %328 = vst [vmem:[#allocation2 + $0x4] sm:$0xf] %v296
  %329 = vst [vmem:[#allocation2 + $0x8] sm:$0xf] %v297
  %330 = vst [vmem:[#allocation2 + $0xc] sm:$0xf] %v298
  %331 = vst [vmem:[#allocation2 + $0x10] sm:$0xf] %v299
  %332 = vst [vmem:[#allocation2 + $0x14] sm:$0xf] %v300
  %333 = vst [vmem:[#allocation2 + $0x18] sm:$0xf] %v301
  %334 = vst [vmem:[#allocation2 + $0x1c] sm:$0xf] %v302
  %335 = vst [vmem:[#allocation2 + $0x20] sm:$0xf] %v303
  %336 = vst [vmem:[#allocation2 + $0x24] sm:$0xf] %v304
  %337 = vst [vmem:[#allocation2 + $0x28] sm:$0xf] %v305
  %338 = vst [vmem:[#allocation2 + $0x2c] sm:$0xf] %v306
  %339 = vst [vmem:[#allocation2 + $0x30] sm:$0xf] %v307
  %340 = vst [vmem:[#allocation2 + $0x34] sm:$0xf] %v308
  %341 = vst [vmem:[#allocation2 + $0x38] sm:$0xf] %v309
  %342 = vst [vmem:[#allocation2 + $0x3c] sm:$0xf] %v310
  %v343 = vld [vmem:[%s3] sm:$0xf]
  %v344 = vld [vmem:[%s3 + $0x4] sm:$0xf]
  %v345 = vld [vmem:[%s3 + $0x8] sm:$0xf]
  %v346 = vld [vmem:[%s3 + $0xc] sm:$0xf]
  %v347 = vld [vmem:[%s3 + $0x10] sm:$0xf]
  %v348 = vld [vmem:[%s3 + $0x14] sm:$0xf]
  %v349 = vld [vmem:[%s3 + $0x18] sm:$0xf]
  %v350 = vld [vmem:[%s3 + $0x1c] sm:$0xf]
  %v351 = vld [vmem:[%s3 + $0x20] sm:$0xf]
  %v352 = vld [vmem:[%s3 + $0x24] sm:$0xf]
  %v353 = vld [vmem:[%s3 + $0x28] sm:$0xf]
  %v354 = vld [vmem:[%s3 + $0x2c] sm:$0xf]
  %v355 = vld [vmem:[%s3 + $0x30] sm:$0xf]
  %v356 = vld [vmem:[%s3 + $0x34] sm:$0xf]
  %v357 = vld [vmem:[%s3 + $0x38] sm:$0xf]
  %v358 = vld [vmem:[%s3 + $0x3c] sm:$0xf]
  %v359 = vld [vmem:[%s6] sm:$0xff]
  %v360 = vld [vmem:[%s6 + $0x8] sm:$0xff]
  %v361 = vld [vmem:[#allocation2] sm:$0xf]
  %v362 = vld [vmem:[#allocation2 + $0x4] sm:$0xf]
  %v363 = vunpack.c.l.bf16 %v361
  %v364 = vunpack.c.l.bf16 %v362
  %v365 = vpack.c.bf16 %v360, %v359
  %v382 = vunpack.c.l.b16 %v343
  %v383 = vunpack.c.l.b16 %v344
  %v384 = vunpack.c.l.b16 %v345
  %v385 = vunpack.c.l.b16 %v346
  %v386 = vunpack.c.l.b16 %v347
  %v387 = vunpack.c.l.b16 %v348
  %v388 = vunpack.c.l.b16 %v349
  %v389 = vunpack.c.l.b16 %v350
  %v390 = vunpack.c.l.b16 %v351
  %v391 = vunpack.c.l.b16 %v352
  %v392 = vunpack.c.l.b16 %v353
  %v393 = vunpack.c.l.b16 %v354
  %v394 = vunpack.c.l.b16 %v355
  %v395 = vunpack.c.l.b16 %v356
  %v396 = vunpack.c.l.b16 %v357
  %v397 = vunpack.c.l.b16 %v358
  %v398 = vpack.c.b16 %v383, %v382
  %v399 = vpack.c.b16 %v385, %v384
  %v400 = vpack.c.b16 %v387, %v386
  %v401 = vpack.c.b16 %v389, %v388
  %v402 = vpack.c.b16 %v391, %v390
  %v403 = vpack.c.b16 %v393, %v392
  %v404 = vpack.c.b16 %v395, %v394
  %v405 = vpack.c.b16 %v397, %v396
  %414 = vmatprep.subr.bf16.mxu0 0
  %415 = vmatpush1.bf16.msra.mxu0 %v405
  %416 = vmatprep.subr.bf16.mxu0 0
  %417 = vmatpush1.bf16.msra.mxu0 %v404
  %418 = vmatprep.subr.bf16.mxu0 0
  %419 = vmatpush1.bf16.msra.mxu0 %v403
  %420 = vmatprep.subr.bf16.mxu0 0
  %421 = vmatpush1.bf16.msra.mxu0 %v402
  %422 = vmatprep.subr.bf16.mxu0 0
  %423 = vmatpush1.bf16.msra.mxu0 %v401
  %424 = vmatprep.subr.bf16.mxu0 0
  %425 = vmatpush1.bf16.msra.mxu0 %v400
  %426 = vmatprep.subr.bf16.mxu0 0
  %427 = vmatpush1.bf16.msra.mxu0 %v399
  %428 = vmatprep.subr.bf16.mxu0 0
  %429 = vmatpush1.bf16.msra.mxu0 %v398
  %430 = vmatprep.subr.bf16.mxu0 0
  %431 = vmatpush2.bf16.msra.mxu0 0
  %432 = vmatprep.subr.bf16.mxu0 0
  %433 = vmatpush2.bf16.msra.mxu0 0
  %434 = vmatprep.subr.bf16.mxu0 0
  %435 = vmatpush2.bf16.msra.mxu0 0
  %436 = vmatprep.subr.bf16.mxu0 0
  %437 = vmatpush2.bf16.msra.mxu0 0
  %438 = vmatprep.subr.bf16.mxu0 0
  %439 = vmatpush2.bf16.msra.mxu0 0
  %440 = vmatprep.subr.bf16.mxu0 0
  %441 = vmatpush2.bf16.msra.mxu0 0
  %442 = vmatprep.subr.bf16.mxu0 0
  %443 = vmatpush2.bf16.msra.mxu0 0
  %444 = vmatprep.subr.bf16.mxu0 0
  %445 = vmatpush2.bf16.msra.mxu0 0
  %446 = vmatprep.mubr.bf16.mxu0 0
  %447 = vmatmul.mubr.bf16.gmra.mxu0 %v365
  %v448 = vpop.f32.mrf.mxu0
  %v449 = vadd.f32 0.0, %v448
  %v450 = vpop.f32.mrf.mxu0
  %v451 = vpop.f32.mrf.mxu0
  %v452 = vadd.f32 0.0, %v451
  %v453 = vpop.f32.mrf.mxu0
  %454 = vdwg.mxu0
  %v455 = vadd.f32 %v363, %v449
  %v456 = vadd.f32 %v364, %v452
  %v457 = vtanh.pop %v455
  %v458 = vtanh.pop %v456
  %v459 = vpack.c.bf16 %v458, %v457
  %v461 = vunpack.c.l.b16 %v459
  %v462 = vunpack.c.h.b16 %v459
  %v463 = vpack.c.b16 %v461, %v461
  %v464 = vpack.c.b16 %v462, %v462
  %467 = vst [vmem:[#allocation2] sm:$0xf] %v463
  %468 = vst [vmem:[#allocation2 + $0x4] sm:$0xf] %v464
  %s469 = scalar_lea.vmem [#allocation2], 8
  %v470 = vld [vmem:[%s469] sm:$0xf]
  %v471 = vld [vmem:[%s469 + $0x4] sm:$0xf]
  %v472 = vunpack.c.l.bf16 %v470
  %v473 = vunpack.c.l.bf16 %v471
  %474 = vmatprep.subr.bf16.mxu0 0
  %475 = vmatpush1.bf16.msra.mxu0 %v405
  %476 = vmatprep.subr.bf16.mxu0 0
  %477 = vmatpush1.bf16.msra.mxu0 %v404
  %478 = vmatprep.subr.bf16.mxu0 0
  %479 = vmatpush1.bf16.msra.mxu0 %v403
  %480 = vmatprep.subr.bf16.mxu0 0
  %481 = vmatpush1.bf16.msra.mxu0 %v402
  %482 = vmatprep.subr.bf16.mxu0 0
  %483 = vmatpush1.bf16.msra.mxu0 %v401
  %484 = vmatprep.subr.bf16.mxu0 0
  %485 = vmatpush1.bf16.msra.mxu0 %v400
  %486 = vmatprep.subr.bf16.mxu0 0
  %487 = vmatpush1.bf16.msra.mxu0 %v399
  %488 = vmatprep.subr.bf16.mxu0 0
  %489 = vmatpush1.bf16.msra.mxu0 %v398
  %490 = vmatprep.subr.bf16.mxu0 0
  %491 = vmatpush2.bf16.msra.mxu0 0
  %492 = vmatprep.subr.bf16.mxu0 0
  %493 = vmatpush2.bf16.msra.mxu0 0
  %494 = vmatprep.subr.bf16.mxu0 0
  %495 = vmatpush2.bf16.msra.mxu0 0
  %496 = vmatprep.subr.bf16.mxu0 0
  %497 = vmatpush2.bf16.msra.mxu0 0
  %498 = vmatprep.subr.bf16.mxu0 0
  %499 = vmatpush2.bf16.msra.mxu0 0
  %500 = vmatprep.subr.bf16.mxu0 0
  %501 = vmatpush2.bf16.msra.mxu0 0
  %502 = vmatprep.subr.bf16.mxu0 0
  %503 = vmatpush2.bf16.msra.mxu0 0
  %504 = vmatprep.subr.bf16.mxu0 0
  %505 = vmatpush2.bf16.msra.mxu0 0
  %506 = vmatprep.mubr.bf16.mxu0 0
  %507 = vmatmul.mubr.bf16.gmra.mxu0 %v459
  %v508 = vpop.f32.mrf.mxu0
  %v509 = vadd.f32 0.0, %v508
  %v510 = vpop.f32.mrf.mxu0
  %v511 = vpop.f32.mrf.mxu0
  %v512 = vadd.f32 0.0, %v511
  %v513 = vpop.f32.mrf.mxu0
  %514 = vdwg.mxu0
  %v515 = vadd.f32 %v472, %v509
  %v516 = vadd.f32 %v473, %v512
  %v517 = vtanh.pop %v515
  %v518 = vtanh.pop %v516
  %v519 = vpack.c.bf16 %v518, %v517
  %v521 = vunpack.c.l.b16 %v519
  %v522 = vunpack.c.h.b16 %v519
  %v523 = vpack.c.b16 %v521, %v521
  %v524 = vpack.c.b16 %v522, %v522
  %527 = vst [vmem:[%s469] sm:$0xf] %v523
  %528 = vst [vmem:[%s469 + $0x4] sm:$0xf] %v524
  %s529 = scalar_lea.vmem [#allocation2], 16
  %v530 = vld [vmem:[%s529] sm:$0xf]
  %v531 = vld [vmem:[%s529 + $0x4] sm:$0xf]
  %v532 = vunpack.c.l.bf16 %v530
  %v533 = vunpack.c.l.bf16 %v531
  %534 = vmatprep.subr.bf16.mxu0 0
  %535 = vmatpush1.bf16.msra.mxu0 %v405
  %536 = vmatprep.subr.bf16.mxu0 0
  %537 = vmatpush1.bf16.msra.mxu0 %v404
  %538 = vmatprep.subr.bf16.mxu0 0
  %539 = vmatpush1.bf16.msra.mxu0 %v403
  %540 = vmatprep.subr.bf16.mxu0 0
  %541 = vmatpush1.bf16.msra.mxu0 %v402
  %542 = vmatprep.subr.bf16.mxu0 0
  %543 = vmatpush1.bf16.msra.mxu0 %v401
  %544 = vmatprep.subr.bf16.mxu0 0
  %545 = vmatpush1.bf16.msra.mxu0 %v400
  %546 = vmatprep.subr.bf16.mxu0 0
  %547 = vmatpush1.bf16.msra.mxu0 %v399
  %548 = vmatprep.subr.bf16.mxu0 0
  %549 = vmatpush1.bf16.msra.mxu0 %v398
  %550 = vmatprep.subr.bf16.mxu0 0
  %551 = vmatpush2.bf16.msra.mxu0 0
  %552 = vmatprep.subr.bf16.mxu0 0
  %553 = vmatpush2.bf16.msra.mxu0 0
  %554 = vmatprep.subr.bf16.mxu0 0
  %555 = vmatpush2.bf16.msra.mxu0 0
  %556 = vmatprep.subr.bf16.mxu0 0
  %557 = vmatpush2.bf16.msra.mxu0 0
  %558 = vmatprep.subr.bf16.mxu0 0
  %559 = vmatpush2.bf16.msra.mxu0 0
  %560 = vmatprep.subr.bf16.mxu0 0
  %561 = vmatpush2.bf16.msra.mxu0 0
  %562 = vmatprep.subr.bf16.mxu0 0
  %563 = vmatpush2.bf16.msra.mxu0 0
  %564 = vmatprep.subr.bf16.mxu0 0
  %565 = vmatpush2.bf16.msra.mxu0 0
  %566 = vmatprep.mubr.bf16.mxu0 0
  %567 = vmatmul.mubr.bf16.gmra.mxu0 %v519
  %v568 = vpop.f32.mrf.mxu0
  %v569 = vadd.f32 0.0, %v568
  %v570 = vpop.f32.mrf.mxu0
  %v571 = vpop.f32.mrf.mxu0
  %v572 = vadd.f32 0.0, %v571
  %v573 = vpop.f32.mrf.mxu0
  %574 = vdwg.mxu0
  %v575 = vadd.f32 %v532, %v569
  %v576 = vadd.f32 %v533, %v572
  %v577 = vtanh.pop %v575
  %v578 = vtanh.pop %v576
  %v579 = vpack.c.bf16 %v578, %v577
  %v581 = vunpack.c.l.b16 %v579
  %v582 = vunpack.c.h.b16 %v579
  %v583 = vpack.c.b16 %v581, %v581
  %v584 = vpack.c.b16 %v582, %v582
  %587 = vst [vmem:[%s529] sm:$0xf] %v583
  %588 = vst [vmem:[%s529 + $0x4] sm:$0xf] %v584
  %s589 = scalar_lea.vmem [#allocation2], 24
  %v590 = vld [vmem:[%s589] sm:$0xf]
  %v591 = vld [vmem:[%s589 + $0x4] sm:$0xf]
  %v592 = vunpack.c.l.bf16 %v590
  %v593 = vunpack.c.l.bf16 %v591
  %594 = vmatprep.subr.bf16.mxu0 0
  %595 = vmatpush1.bf16.msra.mxu0 %v405
  %596 = vmatprep.subr.bf16.mxu0 0
  %597 = vmatpush1.bf16.msra.mxu0 %v404
  %598 = vmatprep.subr.bf16.mxu0 0
  %599 = vmatpush1.bf16.msra.mxu0 %v403
  %600 = vmatprep.subr.bf16.mxu0 0
  %601 = vmatpush1.bf16.msra.mxu0 %v402
  %602 = vmatprep.subr.bf16.mxu0 0
  %603 = vmatpush1.bf16.msra.mxu0 %v401
  %604 = vmatprep.subr.bf16.mxu0 0
  %605 = vmatpush1.bf16.msra.mxu0 %v400
  %606 = vmatprep.subr.bf16.mxu0 0
  %607 = vmatpush1.bf16.msra.mxu0 %v399
  %608 = vmatprep.subr.bf16.mxu0 0
  %609 = vmatpush1.bf16.msra.mxu0 %v398
  %610 = vmatprep.subr.bf16.mxu0 0
  %611 = vmatpush2.bf16.msra.mxu0 0
  %612 = vmatprep.subr.bf16.mxu0 0
  %613 = vmatpush2.bf16.msra.mxu0 0
  %614 = vmatprep.subr.bf16.mxu0 0
  %615 = vmatpush2.bf16.msra.mxu0 0
  %616 = vmatprep.subr.bf16.mxu0 0
  %617 = vmatpush2.bf16.msra.mxu0 0
  %618 = vmatprep.subr.bf16.mxu0 0
  %619 = vmatpush2.bf16.msra.mxu0 0
  %620 = vmatprep.subr.bf16.mxu0 0
  %621 = vmatpush2.bf16.msra.mxu0 0
  %622 = vmatprep.subr.bf16.mxu0 0
  %623 = vmatpush2.bf16.msra.mxu0 0
  %624 = vmatprep.subr.bf16.mxu0 0
  %625 = vmatpush2.bf16.msra.mxu0 0
  %626 = vmatprep.mubr.bf16.mxu0 0
  %627 = vmatmul.mubr.bf16.gmra.mxu0 %v579
  %v628 = vpop.f32.mrf.mxu0
  %v629 = vadd.f32 0.0, %v628
  %v630 = vpop.f32.mrf.mxu0
  %v631 = vpop.f32.mrf.mxu0
  %v632 = vadd.f32 0.0, %v631
  %v633 = vpop.f32.mrf.mxu0
  %634 = vdwg.mxu0
  %v635 = vadd.f32 %v592, %v629
  %v636 = vadd.f32 %v593, %v632
  %v637 = vtanh.pop %v635
  %v638 = vtanh.pop %v636
  %v639 = vpack.c.bf16 %v638, %v637
  %v641 = vunpack.c.l.b16 %v639
  %v642 = vunpack.c.h.b16 %v639
  %v643 = vpack.c.b16 %v641, %v641
  %v644 = vpack.c.b16 %v642, %v642
  %647 = vst [vmem:[%s589] sm:$0xf] %v643
  %648 = vst [vmem:[%s589 + $0x4] sm:$0xf] %v644
  %s649 = scalar_lea.vmem [#allocation2], 32
  %v650 = vld [vmem:[%s649] sm:$0xf]
  %v651 = vld [vmem:[%s649 + $0x4] sm:$0xf]
  %v652 = vunpack.c.l.bf16 %v650
  %v653 = vunpack.c.l.bf16 %v651
  %654 = vmatprep.subr.bf16.mxu0 0
  %655 = vmatpush1.bf16.msra.mxu0 %v405
  %656 = vmatprep.subr.bf16.mxu0 0
  %657 = vmatpush1.bf16.msra.mxu0 %v404
  %658 = vmatprep.subr.bf16.mxu0 0
  %659 = vmatpush1.bf16.msra.mxu0 %v403
  %660 = vmatprep.subr.bf16.mxu0 0
  %661 = vmatpush1.bf16.msra.mxu0 %v402
  %662 = vmatprep.subr.bf16.mxu0 0
  %663 = vmatpush1.bf16.msra.mxu0 %v401
  %664 = vmatprep.subr.bf16.mxu0 0
  %665 = vmatpush1.bf16.msra.mxu0 %v400
  %666 = vmatprep.subr.bf16.mxu0 0
  %667 = vmatpush1.bf16.msra.mxu0 %v399
  %668 = vmatprep.subr.bf16.mxu0 0
  %669 = vmatpush1.bf16.msra.mxu0 %v398
  %670 = vmatprep.subr.bf16.mxu0 0
  %671 = vmatpush2.bf16.msra.mxu0 0
  %672 = vmatprep.subr.bf16.mxu0 0
  %673 = vmatpush2.bf16.msra.mxu0 0
  %674 = vmatprep.subr.bf16.mxu0 0
  %675 = vmatpush2.bf16.msra.mxu0 0
  %676 = vmatprep.subr.bf16.mxu0 0
  %677 = vmatpush2.bf16.msra.mxu0 0
  %678 = vmatprep.subr.bf16.mxu0 0
  %679 = vmatpush2.bf16.msra.mxu0 0
  %680 = vmatprep.subr.bf16.mxu0 0
  %681 = vmatpush2.bf16.msra.mxu0 0
  %682 = vmatprep.subr.bf16.mxu0 0
  %683 = vmatpush2.bf16.msra.mxu0 0
  %684 = vmatprep.subr.bf16.mxu0 0
  %685 = vmatpush2.bf16.msra.mxu0 0
  %686 = vmatprep.mubr.bf16.mxu0 0
  %687 = vmatmul.mubr.bf16.gmra.mxu0 %v639
  %v688 = vpop.f32.mrf.mxu0
  %v689 = vadd.f32 0.0, %v688
  %v690 = vpop.f32.mrf.mxu0
  %v691 = vpop.f32.mrf.mxu0
  %v692 = vadd.f32 0.0, %v691
  %v693 = vpop.f32.mrf.mxu0
  %694 = vdwg.mxu0
  %v695 = vadd.f32 %v652, %v689
  %v696 = vadd.f32 %v653, %v692
  %v697 = vtanh.pop %v695
  %v698 = vtanh.pop %v696
  %v699 = vpack.c.bf16 %v698, %v697
  %v701 = vunpack.c.l.b16 %v699
  %v702 = vunpack.c.h.b16 %v699
  %v703 = vpack.c.b16 %v701, %v701
  %v704 = vpack.c.b16 %v702, %v702
  %707 = vst [vmem:[%s649] sm:$0xf] %v703
  %708 = vst [vmem:[%s649 + $0x4] sm:$0xf] %v704
  %s709 = scalar_lea.vmem [#allocation2], 40
  %v710 = vld [vmem:[%s709] sm:$0xf]
  %v711 = vld [vmem:[%s709 + $0x4] sm:$0xf]
  %v712 = vunpack.c.l.bf16 %v710
  %v713 = vunpack.c.l.bf16 %v711
  %714 = vmatprep.subr.bf16.mxu0 0
  %715 = vmatpush1.bf16.msra.mxu0 %v405
  %716 = vmatprep.subr.bf16.mxu0 0
  %717 = vmatpush1.bf16.msra.mxu0 %v404
  %718 = vmatprep.subr.bf16.mxu0 0
  %719 = vmatpush1.bf16.msra.mxu0 %v403
  %720 = vmatprep.subr.bf16.mxu0 0
  %721 = vmatpush1.bf16.msra.mxu0 %v402
  %722 = vmatprep.subr.bf16.mxu0 0
  %723 = vmatpush1.bf16.msra.mxu0 %v401
  %724 = vmatprep.subr.bf16.mxu0 0
  %725 = vmatpush1.bf16.msra.mxu0 %v400
  %726 = vmatprep.subr.bf16.mxu0 0
  %727 = vmatpush1.bf16.msra.mxu0 %v399
  %728 = vmatprep.subr.bf16.mxu0 0
  %729 = vmatpush1.bf16.msra.mxu0 %v398
  %730 = vmatprep.subr.bf16.mxu0 0
  %731 = vmatpush2.bf16.msra.mxu0 0
  %732 = vmatprep.subr.bf16.mxu0 0
  %733 = vmatpush2.bf16.msra.mxu0 0
  %734 = vmatprep.subr.bf16.mxu0 0
  %735 = vmatpush2.bf16.msra.mxu0 0
  %736 = vmatprep.subr.bf16.mxu0 0
  %737 = vmatpush2.bf16.msra.mxu0 0
  %738 = vmatprep.subr.bf16.mxu0 0
  %739 = vmatpush2.bf16.msra.mxu0 0
  %740 = vmatprep.subr.bf16.mxu0 0
  %741 = vmatpush2.bf16.msra.mxu0 0
  %742 = vmatprep.subr.bf16.mxu0 0
  %743 = vmatpush2.bf16.msra.mxu0 0
  %744 = vmatprep.subr.bf16.mxu0 0
  %745 = vmatpush2.bf16.msra.mxu0 0
  %746 = vmatprep.mubr.bf16.mxu0 0
  %747 = vmatmul.mubr.bf16.gmra.mxu0 %v699
  %v748 = vpop.f32.mrf.mxu0
  %v749 = vadd.f32 0.0, %v748
  %v750 = vpop.f32.mrf.mxu0
  %v751 = vpop.f32.mrf.mxu0
  %v752 = vadd.f32 0.0, %v751
  %v753 = vpop.f32.mrf.mxu0
  %754 = vdwg.mxu0
  %v755 = vadd.f32 %v712, %v749
  %v756 = vadd.f32 %v713, %v752
  %v757 = vtanh.pop %v755
  %v758 = vtanh.pop %v756
  %v759 = vpack.c.bf16 %v758, %v757
  %v761 = vunpack.c.l.b16 %v759
  %v762 = vunpack.c.h.b16 %v759
  %v763 = vpack.c.b16 %v761, %v761
  %v764 = vpack.c.b16 %v762, %v762
  %767 = vst [vmem:[%s709] sm:$0xf] %v763
  %768 = vst [vmem:[%s709 + $0x4] sm:$0xf] %v764
  %s769 = scalar_lea.vmem [#allocation2], 48
  %v770 = vld [vmem:[%s769] sm:$0xf]
  %v771 = vld [vmem:[%s769 + $0x4] sm:$0xf]
  %v772 = vunpack.c.l.bf16 %v770
  %v773 = vunpack.c.l.bf16 %v771
  %774 = vmatprep.subr.bf16.mxu0 0
  %775 = vmatpush1.bf16.msra.mxu0 %v405
  %776 = vmatprep.subr.bf16.mxu0 0
  %777 = vmatpush1.bf16.msra.mxu0 %v404
  %778 = vmatprep.subr.bf16.mxu0 0
  %779 = vmatpush1.bf16.msra.mxu0 %v403
  %780 = vmatprep.subr.bf16.mxu0 0
  %781 = vmatpush1.bf16.msra.mxu0 %v402
  %782 = vmatprep.subr.bf16.mxu0 0
  %783 = vmatpush1.bf16.msra.mxu0 %v401
  %784 = vmatprep.subr.bf16.mxu0 0
  %785 = vmatpush1.bf16.msra.mxu0 %v400
  %786 = vmatprep.subr.bf16.mxu0 0
  %787 = vmatpush1.bf16.msra.mxu0 %v399
  %788 = vmatprep.subr.bf16.mxu0 0
  %789 = vmatpush1.bf16.msra.mxu0 %v398
  %790 = vmatprep.subr.bf16.mxu0 0
  %791 = vmatpush2.bf16.msra.mxu0 0
  %792 = vmatprep.subr.bf16.mxu0 0
  %793 = vmatpush2.bf16.msra.mxu0 0
  %794 = vmatprep.subr.bf16.mxu0 0
  %795 = vmatpush2.bf16.msra.mxu0 0
  %796 = vmatprep.subr.bf16.mxu0 0
  %797 = vmatpush2.bf16.msra.mxu0 0
  %798 = vmatprep.subr.bf16.mxu0 0
  %799 = vmatpush2.bf16.msra.mxu0 0
  %800 = vmatprep.subr.bf16.mxu0 0
  %801 = vmatpush2.bf16.msra.mxu0 0
  %802 = vmatprep.subr.bf16.mxu0 0
  %803 = vmatpush2.bf16.msra.mxu0 0
  %804 = vmatprep.subr.bf16.mxu0 0
  %805 = vmatpush2.bf16.msra.mxu0 0
  %806 = vmatprep.mubr.bf16.mxu0 0
  %807 = vmatmul.mubr.bf16.gmra.mxu0 %v759
  %v808 = vpop.f32.mrf.mxu0
  %v809 = vadd.f32 0.0, %v808
  %v810 = vpop.f32.mrf.mxu0
  %v811 = vpop.f32.mrf.mxu0
  %v812 = vadd.f32 0.0, %v811
  %v813 = vpop.f32.mrf.mxu0
  %814 = vdwg.mxu0
  %v815 = vadd.f32 %v772, %v809
  %v816 = vadd.f32 %v773, %v812
  %v817 = vtanh.pop %v815
  %v818 = vtanh.pop %v816
  %v819 = vpack.c.bf16 %v818, %v817
  %v821 = vunpack.c.l.b16 %v819
  %v822 = vunpack.c.h.b16 %v819
  %v823 = vpack.c.b16 %v821, %v821
  %v824 = vpack.c.b16 %v822, %v822
  %827 = vst [vmem:[%s769] sm:$0xf] %v823
  %828 = vst [vmem:[%s769 + $0x4] sm:$0xf] %v824
  %s829 = scalar_lea.vmem [#allocation2], 56
  %v830 = vld [vmem:[%s829] sm:$0xf]
  %v831 = vld [vmem:[%s829 + $0x4] sm:$0xf]
  %v832 = vunpack.c.l.bf16 %v830
  %v833 = vunpack.c.l.bf16 %v831
  %834 = vmatprep.subr.bf16.mxu0 0
  %835 = vmatpush1.bf16.msra.mxu0 %v405
  %836 = vmatprep.subr.bf16.mxu0 0
  %837 = vmatpush1.bf16.msra.mxu0 %v404
  %838 = vmatprep.subr.bf16.mxu0 0
  %839 = vmatpush1.bf16.msra.mxu0 %v403
  %840 = vmatprep.subr.bf16.mxu0 0
  %841 = vmatpush1.bf16.msra.mxu0 %v402
  %842 = vmatprep.subr.bf16.mxu0 0
  %843 = vmatpush1.bf16.msra.mxu0 %v401
  %844 = vmatprep.subr.bf16.mxu0 0
  %845 = vmatpush1.bf16.msra.mxu0 %v400
  %846 = vmatprep.subr.bf16.mxu0 0
  %847 = vmatpush1.bf16.msra.mxu0 %v399
  %848 = vmatprep.subr.bf16.mxu0 0
  %849 = vmatpush1.bf16.msra.mxu0 %v398
  %850 = vmatprep.subr.bf16.mxu0 0
  %851 = vmatpush2.bf16.msra.mxu0 0
  %852 = vmatprep.subr.bf16.mxu0 0
  %853 = vmatpush2.bf16.msra.mxu0 0
  %854 = vmatprep.subr.bf16.mxu0 0
  %855 = vmatpush2.bf16.msra.mxu0 0
  %856 = vmatprep.subr.bf16.mxu0 0
  %857 = vmatpush2.bf16.msra.mxu0 0
  %858 = vmatprep.subr.bf16.mxu0 0
  %859 = vmatpush2.bf16.msra.mxu0 0
  %860 = vmatprep.subr.bf16.mxu0 0
  %861 = vmatpush2.bf16.msra.mxu0 0
  %862 = vmatprep.subr.bf16.mxu0 0
  %863 = vmatpush2.bf16.msra.mxu0 0
  %864 = vmatprep.subr.bf16.mxu0 0
  %865 = vmatpush2.bf16.msra.mxu0 0
  %866 = vmatprep.mubr.bf16.mxu0 0
  %867 = vmatmul.mubr.bf16.gmra.mxu0 %v819
  %v868 = vpop.f32.mrf.mxu0
  %v869 = vadd.f32 0.0, %v868
  %v870 = vpop.f32.mrf.mxu0
  %v871 = vpop.f32.mrf.mxu0
  %v872 = vadd.f32 0.0, %v871
  %v873 = vpop.f32.mrf.mxu0
  %874 = vdwg.mxu0
  %v875 = vadd.f32 %v832, %v869
  %v876 = vadd.f32 %v833, %v872
  %v877 = vtanh.pop %v875
  %v878 = vtanh.pop %v876
  %v879 = vpack.c.bf16 %v878, %v877
  %v881 = vunpack.c.l.b16 %v879
  %v882 = vunpack.c.h.b16 %v879
  %v883 = vpack.c.b16 %v881, %v881
  %v884 = vpack.c.b16 %v882, %v882
  %887 = vst [vmem:[%s829] sm:$0xf] %v883
  %888 = vst [vmem:[%s829 + $0x4] sm:$0xf] %v884
  %889 = vst [vmem:[%s6] sm:$0xff] %v877
  %890 = vst [vmem:[%s6 + $0x8] sm:$0xff] %v878
  %v891 = vld [vmem:[#allocation2] sm:$0xf]
  %v892 = vld [vmem:[#allocation2 + $0x4] sm:$0xf]
  %v893 = vld [vmem:[#allocation2 + $0x8] sm:$0xf]
  %v894 = vld [vmem:[#allocation2 + $0xc] sm:$0xf]
  %v895 = vld [vmem:[#allocation2 + $0x10] sm:$0xf]
  %v896 = vld [vmem:[#allocation2 + $0x14] sm:$0xf]
  %v897 = vld [vmem:[#allocation2 + $0x18] sm:$0xf]
  %v898 = vld [vmem:[#allocation2 + $0x1c] sm:$0xf]
  %v899 = vld [vmem:[#allocation2 + $0x20] sm:$0xf]
  %v900 = vld [vmem:[#allocation2 + $0x24] sm:$0xf]
  %v901 = vld [vmem:[#allocation2 + $0x28] sm:$0xf]
  %v902 = vld [vmem:[#allocation2 + $0x2c] sm:$0xf]
  %v903 = vld [vmem:[#allocation2 + $0x30] sm:$0xf]
  %v904 = vld [vmem:[#allocation2 + $0x34] sm:$0xf]
  %v905 = vld [vmem:[#allocation2 + $0x38] sm:$0xf]
  %v906 = vld [vmem:[#allocation2 + $0x3c] sm:$0xf]
  %v907 = vld [vmem:[%s2] sm:$0xf]
  %v908 = vld [vmem:[%s2 + $0x4] sm:$0xf]
  %v909 = vld [vmem:[%s2 + $0x8] sm:$0xf]
  %v910 = vld [vmem:[%s2 + $0xc] sm:$0xf]
  %v911 = vld [vmem:[%s2 + $0x10] sm:$0xf]
  %v912 = vld [vmem:[%s2 + $0x14] sm:$0xf]
  %v913 = vld [vmem:[%s2 + $0x18] sm:$0xf]
  %v914 = vld [vmem:[%s2 + $0x1c] sm:$0xf]
  %v915 = vld [vmem:[%s2 + $0x20] sm:$0xf]
  %v916 = vld [vmem:[%s2 + $0x24] sm:$0xf]
  %v917 = vld [vmem:[%s2 + $0x28] sm:$0xf]
  %v918 = vld [vmem:[%s2 + $0x2c] sm:$0xf]
  %v919 = vld [vmem:[%s2 + $0x30] sm:$0xf]
  %v920 = vld [vmem:[%s2 + $0x34] sm:$0xf]
  %v921 = vld [vmem:[%s2 + $0x38] sm:$0xf]
  %v922 = vld [vmem:[%s2 + $0x3c] sm:$0xf]
  %s923 = scalar_lea.vmem %s4, 1
  %v924 = vld [vmem:[%s923] sm:$0x1]
  %v926 = vlaneseq
  %v927 = vshrl.u32 %v926, 7
  %v928 = vsub.s32 0, %v927
  %v929 = vrot.slane %v924, %v928
  %v947 = vunpack.c.l.b16 %v891
  %v948 = vunpack.c.l.b16 %v892
  %v949 = vunpack.c.l.b16 %v893
  %v950 = vunpack.c.l.b16 %v894
  %v951 = vunpack.c.l.b16 %v895
  %v952 = vunpack.c.l.b16 %v896
  %v953 = vunpack.c.l.b16 %v897
  %v954 = vunpack.c.l.b16 %v898
  %v955 = vunpack.c.l.b16 %v899
  %v956 = vunpack.c.l.b16 %v900
  %v957 = vunpack.c.l.b16 %v901
  %v958 = vunpack.c.l.b16 %v902
  %v959 = vunpack.c.l.b16 %v903
  %v960 = vunpack.c.l.b16 %v904
  %v961 = vunpack.c.l.b16 %v905
  %v962 = vunpack.c.l.b16 %v906
  %v963 = vpack.c.b16 %v948, %v947
  %v964 = vpack.c.b16 %v950, %v949
  %v965 = vpack.c.b16 %v952, %v951
  %v966 = vpack.c.b16 %v954, %v953
  %v967 = vpack.c.b16 %v956, %v955
  %v968 = vpack.c.b16 %v958, %v957
  %v969 = vpack.c.b16 %v960, %v959
  %v970 = vpack.c.b16 %v962, %v961
  %v995 = vunpack.c.l.b16 %v907
  %v996 = vunpack.c.l.b16 %v908
  %v997 = vunpack.c.l.b16 %v909
  %v998 = vunpack.c.l.b16 %v910
  %v999 = vunpack.c.l.b16 %v911
  %v1000 = vunpack.c.l.b16 %v912
  %v1001 = vunpack.c.l.b16 %v913
  %v1002 = vunpack.c.l.b16 %v914
  %v1003 = vunpack.c.l.b16 %v915
  %v1004 = vunpack.c.l.b16 %v916
  %v1005 = vunpack.c.l.b16 %v917
  %v1006 = vunpack.c.l.b16 %v918
  %v1007 = vunpack.c.l.b16 %v919
  %v1008 = vunpack.c.l.b16 %v920
  %v1009 = vunpack.c.l.b16 %v921
  %v1010 = vunpack.c.l.b16 %v922
  %v1011 = vpack.c.b16 %v996, %v995
  %v1012 = vpack.c.b16 %v998, %v997
  %v1013 = vpack.c.b16 %v1000, %v999
  %v1014 = vpack.c.b16 %v1002, %v1001
  %v1015 = vpack.c.b16 %v1004, %v1003
  %v1016 = vpack.c.b16 %v1006, %v1005
  %v1017 = vpack.c.b16 %v1008, %v1007
  %v1018 = vpack.c.b16 %v1010, %v1009
  %1027 = vmatprep.subr.bf16.mxu0 0
  %1028 = vmatpush1.bf16.msra.mxu0 %v1018
  %1029 = vmatprep.subr.bf16.mxu0 0
  %1030 = vmatpush1.bf16.msra.mxu0 %v1017
  %1031 = vmatprep.subr.bf16.mxu0 0
  %1032 = vmatpush1.bf16.msra.mxu0 %v1016
  %1033 = vmatprep.subr.bf16.mxu0 0
  %1034 = vmatpush1.bf16.msra.mxu0 %v1015
  %1035 = vmatprep.subr.bf16.mxu0 0
  %1036 = vmatpush1.bf16.msra.mxu0 %v1014
  %1037 = vmatprep.subr.bf16.mxu0 0
  %1038 = vmatpush1.bf16.msra.mxu0 %v1013
  %1039 = vmatprep.subr.bf16.mxu0 0
  %1040 = vmatpush1.bf16.msra.mxu0 %v1012
  %1041 = vmatprep.subr.bf16.mxu0 0
  %1042 = vmatpush1.bf16.msra.mxu0 %v1011
  %1043 = vmatprep.subr.bf16.mxu0 0
  %1044 = vmatpush2.bf16.msra.mxu0 0
  %1045 = vmatprep.subr.bf16.mxu0 0
  %1046 = vmatpush2.bf16.msra.mxu0 0
  %1047 = vmatprep.subr.bf16.mxu0 0
  %1048 = vmatpush2.bf16.msra.mxu0 0
  %1049 = vmatprep.subr.bf16.mxu0 0
  %1050 = vmatpush2.bf16.msra.mxu0 0
  %1051 = vmatprep.subr.bf16.mxu0 0
  %1052 = vmatpush2.bf16.msra.mxu0 0
  %1053 = vmatprep.subr.bf16.mxu0 0
  %1054 = vmatpush2.bf16.msra.mxu0 0
  %1055 = vmatprep.subr.bf16.mxu0 0
  %1056 = vmatpush2.bf16.msra.mxu0 0
  %1057 = vmatprep.subr.bf16.mxu0 0
  %1058 = vmatpush2.bf16.msra.mxu0 0
  %1059 = vmatprep.mubr.bf16.mxu0 0
  %1060 = vmatmul.mubr.bf16.gmra.mxu0 %v963
  %v1061 = vpop.f32.mrf.mxu0
  %v1062 = vadd.f32 %v929, %v1061
  %v1063 = vpop.f32.mrf.mxu0
  %v1064 = vpop.f32.mrf.mxu0
  %v1065 = vadd.f32 %v929, %v1064
  %v1066 = vpop.f32.mrf.mxu0
  %1067 = vmatprep.mubr.bf16.mxu0 0
  %1068 = vmatmul.mubr.bf16.gmra.mxu0 %v964
  %v1069 = vpop.f32.mrf.mxu0
  %v1070 = vadd.f32 %v929, %v1069
  %v1071 = vpop.f32.mrf.mxu0
  %v1072 = vpop.f32.mrf.mxu0
  %v1073 = vadd.f32 %v929, %v1072
  %v1074 = vpop.f32.mrf.mxu0
  %1075 = vmatprep.mubr.bf16.mxu0 0
  %1076 = vmatmul.mubr.bf16.gmra.mxu0 %v965
  %v1077 = vpop.f32.mrf.mxu0
  %v1078 = vadd.f32 %v929, %v1077
  %v1079 = vpop.f32.mrf.mxu0
  %v1080 = vpop.f32.mrf.mxu0
  %v1081 = vadd.f32 %v929, %v1080
  %v1082 = vpop.f32.mrf.mxu0
  %1083 = vmatprep.mubr.bf16.mxu0 0
  %1084 = vmatmul.mubr.bf16.gmra.mxu0 %v966
  %v1085 = vpop.f32.mrf.mxu0
  %v1086 = vadd.f32 %v929, %v1085
  %v1087 = vpop.f32.mrf.mxu0
  %v1088 = vpop.f32.mrf.mxu0
  %v1089 = vadd.f32 %v929, %v1088
  %v1090 = vpop.f32.mrf.mxu0
  %1091 = vmatprep.mubr.bf16.mxu0 0
  %1092 = vmatmul.mubr.bf16.gmra.mxu0 %v967
  %v1093 = vpop.f32.mrf.mxu0
  %v1094 = vadd.f32 %v929, %v1093
  %v1095 = vpop.f32.mrf.mxu0
  %v1096 = vpop.f32.mrf.mxu0
  %v1097 = vadd.f32 %v929, %v1096
  %v1098 = vpop.f32.mrf.mxu0
  %1099 = vmatprep.mubr.bf16.mxu0 0
  %1100 = vmatmul.mubr.bf16.gmra.mxu0 %v968
  %v1101 = vpop.f32.mrf.mxu0
  %v1102 = vadd.f32 %v929, %v1101
  %v1103 = vpop.f32.mrf.mxu0
  %v1104 = vpop.f32.mrf.mxu0
  %v1105 = vadd.f32 %v929, %v1104
  %v1106 = vpop.f32.mrf.mxu0
  %1107 = vmatprep.mubr.bf16.mxu0 0
  %1108 = vmatmul.mubr.bf16.gmra.mxu0 %v969
  %v1109 = vpop.f32.mrf.mxu0
  %v1110 = vadd.f32 %v929, %v1109
  %v1111 = vpop.f32.mrf.mxu0
  %v1112 = vpop.f32.mrf.mxu0
  %v1113 = vadd.f32 %v929, %v1112
  %v1114 = vpop.f32.mrf.mxu0
  %1115 = vmatprep.mubr.bf16.mxu0 0
  %1116 = vmatmul.mubr.bf16.gmra.mxu0 %v970
  %v1117 = vpop.f32.mrf.mxu0
  %v1118 = vadd.f32 %v929, %v1117
  %v1119 = vpop.f32.mrf.mxu0
  %v1120 = vpop.f32.mrf.mxu0
  %v1121 = vadd.f32 %v929, %v1120
  %v1122 = vpop.f32.mrf.mxu0
  %1123 = vdwg.mxu0
  %1124 = vst [vmem:[%s5] sm:$0xff] %v1062
  %1125 = vst [vmem:[%s5 + $0x8] sm:$0xff] %v1065
  %1126 = vst [vmem:[%s5 + $0x10] sm:$0xff] %v1070
  %1127 = vst [vmem:[%s5 + $0x18] sm:$0xff] %v1073
  %1128 = vst [vmem:[%s5 + $0x20] sm:$0xff] %v1078
  %1129 = vst [vmem:[%s5 + $0x28] sm:$0xff] %v1081
  %1130 = vst [vmem:[%s5 + $0x30] sm:$0xff] %v1086
  %1131 = vst [vmem:[%s5 + $0x38] sm:$0xff] %v1089
  %1132 = vst [vmem:[%s5 + $0x40] sm:$0xff] %v1094
  %1133 = vst [vmem:[%s5 + $0x48] sm:$0xff] %v1097
  %1134 = vst [vmem:[%s5 + $0x50] sm:$0xff] %v1102
  %1135 = vst [vmem:[%s5 + $0x58] sm:$0xff] %v1105
  %1136 = vst [vmem:[%s5 + $0x60] sm:$0xff] %v1110
  %1137 = vst [vmem:[%s5 + $0x68] sm:$0xff] %v1113
  %1138 = vst [vmem:[%s5 + $0x70] sm:$0xff] %v1118
  %1139 = vst [vmem:[%s5 + $0x78] sm:$0xff] %v1121
  %s1140 = scalar_lea.vmem %s3, 64
  %v1141 = vld [vmem:[%s1140] sm:$0xf]
  %v1142 = vld [vmem:[%s1140 + $0x4] sm:$0xf]
  %v1143 = vld [vmem:[%s1140 + $0x8] sm:$0xf]
  %v1144 = vld [vmem:[%s1140 + $0xc] sm:$0xf]
  %v1145 = vld [vmem:[%s1140 + $0x10] sm:$0xf]
  %v1146 = vld [vmem:[%s1140 + $0x14] sm:$0xf]
  %v1147 = vld [vmem:[%s1140 + $0x18] sm:$0xf]
  %v1148 = vld [vmem:[%s1140 + $0x1c] sm:$0xf]
  %v1149 = vld [vmem:[%s1140 + $0x20] sm:$0xf]
  %v1150 = vld [vmem:[%s1140 + $0x24] sm:$0xf]
  %v1151 = vld [vmem:[%s1140 + $0x28] sm:$0xf]
  %v1152 = vld [vmem:[%s1140 + $0x2c] sm:$0xf]
  %v1153 = vld [vmem:[%s1140 + $0x30] sm:$0xf]
  %v1154 = vld [vmem:[%s1140 + $0x34] sm:$0xf]
  %v1155 = vld [vmem:[%s1140 + $0x38] sm:$0xf]
  %v1156 = vld [vmem:[%s1140 + $0x3c] sm:$0xf]
  %s1157 = scalar_lea.vmem %s6, 16
  %v1158 = vld [vmem:[%s1157] sm:$0xff]
  %v1159 = vld [vmem:[%s1157 + $0x8] sm:$0xff]
  %v1160 = vld [vmem:[%s5] sm:$0xff]
  %v1161 = vld [vmem:[%s5 + $0x8] sm:$0xff]
  %v1162 = vpack.c.bf16 %v1159, %v1158
  %v1179 = vunpack.c.l.b16 %v1141
  %v1180 = vunpack.c.l.b16 %v1142
  %v1181 = vunpack.c.l.b16 %v1143
  %v1182 = vunpack.c.l.b16 %v1144
  %v1183 = vunpack.c.l.b16 %v1145
  %v1184 = vunpack.c.l.b16 %v1146
  %v1185 = vunpack.c.l.b16 %v1147
  %v1186 = vunpack.c.l.b16 %v1148
  %v1187 = vunpack.c.l.b16 %v1149
  %v1188 = vunpack.c.l.b16 %v1150
  %v1189 = vunpack.c.l.b16 %v1151
  %v1190 = vunpack.c.l.b16 %v1152
  %v1191 = vunpack.c.l.b16 %v1153
  %v1192 = vunpack.c.l.b16 %v1154
  %v1193 = vunpack.c.l.b16 %v1155
  %v1194 = vunpack.c.l.b16 %v1156
  %v1195 = vpack.c.b16 %v1180, %v1179
  %v1196 = vpack.c.b16 %v1182, %v1181
  %v1197 = vpack.c.b16 %v1184, %v1183
  %v1198 = vpack.c.b16 %v1186, %v1185
  %v1199 = vpack.c.b16 %v1188, %v1187
  %v1200 = vpack.c.b16 %v1190, %v1189
  %v1201 = vpack.c.b16 %v1192, %v1191
  %v1202 = vpack.c.b16 %v1194, %v1193
  %1211 = vmatprep.subr.bf16.mxu0 0
  %1212 = vmatpush1.bf16.msra.mxu0 %v1202
  %1213 = vmatprep.subr.bf16.mxu0 0
  %1214 = vmatpush1.bf16.msra.mxu0 %v1201
  %1215 = vmatprep.subr.bf16.mxu0 0
  %1216 = vmatpush1.bf16.msra.mxu0 %v1200
  %1217 = vmatprep.subr.bf16.mxu0 0
  %1218 = vmatpush1.bf16.msra.mxu0 %v1199
  %1219 = vmatprep.subr.bf16.mxu0 0
  %1220 = vmatpush1.bf16.msra.mxu0 %v1198
  %1221 = vmatprep.subr.bf16.mxu0 0
  %1222 = vmatpush1.bf16.msra.mxu0 %v1197
  %1223 = vmatprep.subr.bf16.mxu0 0
  %1224 = vmatpush1.bf16.msra.mxu0 %v1196
  %1225 = vmatprep.subr.bf16.mxu0 0
  %1226 = vmatpush1.bf16.msra.mxu0 %v1195
  %1227 = vmatprep.subr.bf16.mxu0 0
  %1228 = vmatpush2.bf16.msra.mxu0 0
  %1229 = vmatprep.subr.bf16.mxu0 0
  %1230 = vmatpush2.bf16.msra.mxu0 0
  %1231 = vmatprep.subr.bf16.mxu0 0
  %1232 = vmatpush2.bf16.msra.mxu0 0
  %1233 = vmatprep.subr.bf16.mxu0 0
  %1234 = vmatpush2.bf16.msra.mxu0 0
  %1235 = vmatprep.subr.bf16.mxu0 0
  %1236 = vmatpush2.bf16.msra.mxu0 0
  %1237 = vmatprep.subr.bf16.mxu0 0
  %1238 = vmatpush2.bf16.msra.mxu0 0
  %1239 = vmatprep.subr.bf16.mxu0 0
  %1240 = vmatpush2.bf16.msra.mxu0 0
  %1241 = vmatprep.subr.bf16.mxu0 0
  %1242 = vmatpush2.bf16.msra.mxu0 0
  %1243 = vmatprep.mubr.bf16.mxu0 0
  %1244 = vmatmul.mubr.bf16.gmra.mxu0 %v1162
  %v1245 = vpop.f32.mrf.mxu0
  %v1246 = vadd.f32 0.0, %v1245
  %v1247 = vpop.f32.mrf.mxu0
  %v1248 = vpop.f32.mrf.mxu0
  %v1249 = vadd.f32 0.0, %v1248
  %v1250 = vpop.f32.mrf.mxu0
  %1251 = vdwg.mxu0
  %v1252 = vadd.f32 %v1160, %v1246
  %v1253 = vadd.f32 %v1161, %v1249
  %v1254 = vtanh.pop %v1252
  %v1255 = vtanh.pop %v1253
  %1256 = vst [vmem:[%s5] sm:$0xff] %v1254
  %1257 = vst [vmem:[%s5 + $0x8] sm:$0xff] %v1255
  %s1258 = scalar_lea.vmem %s5, 16
  %v1259 = vld [vmem:[%s1258] sm:$0xff]
  %v1260 = vld [vmem:[%s1258 + $0x8] sm:$0xff]
  %v1261 = vpack.c.bf16 %v1255, %v1254
  %1262 = vmatprep.subr.bf16.mxu0 0
  %1263 = vmatpush1.bf16.msra.mxu0 %v1202
  %1264 = vmatprep.subr.bf16.mxu0 0
  %1265 = vmatpush1.bf16.msra.mxu0 %v1201
  %1266 = vmatprep.subr.bf16.mxu0 0
  %1267 = vmatpush1.bf16.msra.mxu0 %v1200
  %1268 = vmatprep.subr.bf16.mxu0 0
  %1269 = vmatpush1.bf16.msra.mxu0 %v1199
  %1270 = vmatprep.subr.bf16.mxu0 0
  %1271 = vmatpush1.bf16.msra.mxu0 %v1198
  %1272 = vmatprep.subr.bf16.mxu0 0
  %1273 = vmatpush1.bf16.msra.mxu0 %v1197
  %1274 = vmatprep.subr.bf16.mxu0 0
  %1275 = vmatpush1.bf16.msra.mxu0 %v1196
  %1276 = vmatprep.subr.bf16.mxu0 0
  %1277 = vmatpush1.bf16.msra.mxu0 %v1195
  %1278 = vmatprep.subr.bf16.mxu0 0
  %1279 = vmatpush2.bf16.msra.mxu0 0
  %1280 = vmatprep.subr.bf16.mxu0 0
  %1281 = vmatpush2.bf16.msra.mxu0 0
  %1282 = vmatprep.subr.bf16.mxu0 0
  %1283 = vmatpush2.bf16.msra.mxu0 0
  %1284 = vmatprep.subr.bf16.mxu0 0
  %1285 = vmatpush2.bf16.msra.mxu0 0
  %1286 = vmatprep.subr.bf16.mxu0 0
  %1287 = vmatpush2.bf16.msra.mxu0 0
  %1288 = vmatprep.subr.bf16.mxu0 0
  %1289 = vmatpush2.bf16.msra.mxu0 0
  %1290 = vmatprep.subr.bf16.mxu0 0
  %1291 = vmatpush2.bf16.msra.mxu0 0
  %1292 = vmatprep.subr.bf16.mxu0 0
  %1293 = vmatpush2.bf16.msra.mxu0 0
  %1294 = vmatprep.mubr.bf16.mxu0 0
  %1295 = vmatmul.mubr.bf16.gmra.mxu0 %v1261
  %v1296 = vpop.f32.mrf.mxu0
  %v1297 = vadd.f32 0.0, %v1296
  %v1298 = vpop.f32.mrf.mxu0
  %v1299 = vpop.f32.mrf.mxu0
  %v1300 = vadd.f32 0.0, %v1299
  %v1301 = vpop.f32.mrf.mxu0
  %1302 = vdwg.mxu0
  %v1303 = vadd.f32 %v1259, %v1297
  %v1304 = vadd.f32 %v1260, %v1300
  %v1305 = vtanh.pop %v1303
  %v1306 = vtanh.pop %v1304
  %1307 = vst [vmem:[%s1258] sm:$0xff] %v1305
  %1308 = vst [vmem:[%s1258 + $0x8] sm:$0xff] %v1306
  %s1309 = scalar_lea.vmem %s5, 32
  %v1310 = vld [vmem:[%s1309] sm:$0xff]
  %v1311 = vld [vmem:[%s1309 + $0x8] sm:$0xff]
  %v1312 = vpack.c.bf16 %v1306, %v1305
  %1313 = vmatprep.subr.bf16.mxu0 0
  %1314 = vmatpush1.bf16.msra.mxu0 %v1202
  %1315 = vmatprep.subr.bf16.mxu0 0
  %1316 = vmatpush1.bf16.msra.mxu0 %v1201
  %1317 = vmatprep.subr.bf16.mxu0 0
  %1318 = vmatpush1.bf16.msra.mxu0 %v1200
  %1319 = vmatprep.subr.bf16.mxu0 0
  %1320 = vmatpush1.bf16.msra.mxu0 %v1199
  %1321 = vmatprep.subr.bf16.mxu0 0
  %1322 = vmatpush1.bf16.msra.mxu0 %v1198
  %1323 = vmatprep.subr.bf16.mxu0 0
  %1324 = vmatpush1.bf16.msra.mxu0 %v1197
  %1325 = vmatprep.subr.bf16.mxu0 0
  %1326 = vmatpush1.bf16.msra.mxu0 %v1196
  %1327 = vmatprep.subr.bf16.mxu0 0
  %1328 = vmatpush1.bf16.msra.mxu0 %v1195
  %1329 = vmatprep.subr.bf16.mxu0 0
  %1330 = vmatpush2.bf16.msra.mxu0 0
  %1331 = vmatprep.subr.bf16.mxu0 0
  %1332 = vmatpush2.bf16.msra.mxu0 0
  %1333 = vmatprep.subr.bf16.mxu0 0
  %1334 = vmatpush2.bf16.msra.mxu0 0
  %1335 = vmatprep.subr.bf16.mxu0 0
  %1336 = vmatpush2.bf16.msra.mxu0 0
  %1337 = vmatprep.subr.bf16.mxu0 0
  %1338 = vmatpush2.bf16.msra.mxu0 0
  %1339 = vmatprep.subr.bf16.mxu0 0
  %1340 = vmatpush2.bf16.msra.mxu0 0
  %1341 = vmatprep.subr.bf16.mxu0 0
  %1342 = vmatpush2.bf16.msra.mxu0 0
  %1343 = vmatprep.subr.bf16.mxu0 0
  %1344 = vmatpush2.bf16.msra.mxu0 0
  %1345 = vmatprep.mubr.bf16.mxu0 0
  %1346 = vmatmul.mubr.bf16.gmra.mxu0 %v1312
  %v1347 = vpop.f32.mrf.mxu0
  %v1348 = vadd.f32 0.0, %v1347
  %v1349 = vpop.f32.mrf.mxu0
  %v1350 = vpop.f32.mrf.mxu0
  %v1351 = vadd.f32 0.0, %v1350
  %v1352 = vpop.f32.mrf.mxu0
  %1353 = vdwg.mxu0
  %v1354 = vadd.f32 %v1310, %v1348
  %v1355 = vadd.f32 %v1311, %v1351
  %v1356 = vtanh.pop %v1354
  %v1357 = vtanh.pop %v1355
  %1358 = vst [vmem:[%s1309] sm:$0xff] %v1356
  %1359 = vst [vmem:[%s1309 + $0x8] sm:$0xff] %v1357
  %s1360 = scalar_lea.vmem %s5, 48
  %v1361 = vld [vmem:[%s1360] sm:$0xff]
  %v1362 = vld [vmem:[%s1360 + $0x8] sm:$0xff]
  %v1363 = vpack.c.bf16 %v1357, %v1356
  %1364 = vmatprep.subr.bf16.mxu0 0
  %1365 = vmatpush1.bf16.msra.mxu0 %v1202
  %1366 = vmatprep.subr.bf16.mxu0 0
  %1367 = vmatpush1.bf16.msra.mxu0 %v1201
  %1368 = vmatprep.subr.bf16.mxu0 0
  %1369 = vmatpush1.bf16.msra.mxu0 %v1200
  %1370 = vmatprep.subr.bf16.mxu0 0
  %1371 = vmatpush1.bf16.msra.mxu0 %v1199
  %1372 = vmatprep.subr.bf16.mxu0 0
  %1373 = vmatpush1.bf16.msra.mxu0 %v1198
  %1374 = vmatprep.subr.bf16.mxu0 0
  %1375 = vmatpush1.bf16.msra.mxu0 %v1197
  %1376 = vmatprep.subr.bf16.mxu0 0
  %1377 = vmatpush1.bf16.msra.mxu0 %v1196
  %1378 = vmatprep.subr.bf16.mxu0 0
  %1379 = vmatpush1.bf16.msra.mxu0 %v1195
  %1380 = vmatprep.subr.bf16.mxu0 0
  %1381 = vmatpush2.bf16.msra.mxu0 0
  %1382 = vmatprep.subr.bf16.mxu0 0
  %1383 = vmatpush2.bf16.msra.mxu0 0
  %1384 = vmatprep.subr.bf16.mxu0 0
  %1385 = vmatpush2.bf16.msra.mxu0 0
  %1386 = vmatprep.subr.bf16.mxu0 0
  %1387 = vmatpush2.bf16.msra.mxu0 0
  %1388 = vmatprep.subr.bf16.mxu0 0
  %1389 = vmatpush2.bf16.msra.mxu0 0
  %1390 = vmatprep.subr.bf16.mxu0 0
  %1391 = vmatpush2.bf16.msra.mxu0 0
  %1392 = vmatprep.subr.bf16.mxu0 0
  %1393 = vmatpush2.bf16.msra.mxu0 0
  %1394 = vmatprep.subr.bf16.mxu0 0
  %1395 = vmatpush2.bf16.msra.mxu0 0
  %1396 = vmatprep.mubr.bf16.mxu0 0
  %1397 = vmatmul.mubr.bf16.gmra.mxu0 %v1363
  %v1398 = vpop.f32.mrf.mxu0
  %v1399 = vadd.f32 0.0, %v1398
  %v1400 = vpop.f32.mrf.mxu0
  %v1401 = vpop.f32.mrf.mxu0
  %v1402 = vadd.f32 0.0, %v1401
  %v1403 = vpop.f32.mrf.mxu0
  %1404 = vdwg.mxu0
  %v1405 = vadd.f32 %v1361, %v1399
  %v1406 = vadd.f32 %v1362, %v1402
  %v1407 = vtanh.pop %v1405
  %v1408 = vtanh.pop %v1406
  %1409 = vst [vmem:[%s1360] sm:$0xff] %v1407
  %1410 = vst [vmem:[%s1360 + $0x8] sm:$0xff] %v1408
  %s1411 = scalar_lea.vmem %s5, 64
  %v1412 = vld [vmem:[%s1411] sm:$0xff]
  %v1413 = vld [vmem:[%s1411 + $0x8] sm:$0xff]
  %v1414 = vpack.c.bf16 %v1408, %v1407
  %1415 = vmatprep.subr.bf16.mxu0 0
  %1416 = vmatpush1.bf16.msra.mxu0 %v1202
  %1417 = vmatprep.subr.bf16.mxu0 0
  %1418 = vmatpush1.bf16.msra.mxu0 %v1201
  %1419 = vmatprep.subr.bf16.mxu0 0
  %1420 = vmatpush1.bf16.msra.mxu0 %v1200
  %1421 = vmatprep.subr.bf16.mxu0 0
  %1422 = vmatpush1.bf16.msra.mxu0 %v1199
  %1423 = vmatprep.subr.bf16.mxu0 0
  %1424 = vmatpush1.bf16.msra.mxu0 %v1198
  %1425 = vmatprep.subr.bf16.mxu0 0
  %1426 = vmatpush1.bf16.msra.mxu0 %v1197
  %1427 = vmatprep.subr.bf16.mxu0 0
  %1428 = vmatpush1.bf16.msra.mxu0 %v1196
  %1429 = vmatprep.subr.bf16.mxu0 0
  %1430 = vmatpush1.bf16.msra.mxu0 %v1195
  %1431 = vmatprep.subr.bf16.mxu0 0
  %1432 = vmatpush2.bf16.msra.mxu0 0
  %1433 = vmatprep.subr.bf16.mxu0 0
  %1434 = vmatpush2.bf16.msra.mxu0 0
  %1435 = vmatprep.subr.bf16.mxu0 0
  %1436 = vmatpush2.bf16.msra.mxu0 0
  %1437 = vmatprep.subr.bf16.mxu0 0
  %1438 = vmatpush2.bf16.msra.mxu0 0
  %1439 = vmatprep.subr.bf16.mxu0 0
  %1440 = vmatpush2.bf16.msra.mxu0 0
  %1441 = vmatprep.subr.bf16.mxu0 0
  %1442 = vmatpush2.bf16.msra.mxu0 0
  %1443 = vmatprep.subr.bf16.mxu0 0
  %1444 = vmatpush2.bf16.msra.mxu0 0
  %1445 = vmatprep.subr.bf16.mxu0 0
  %1446 = vmatpush2.bf16.msra.mxu0 0
  %1447 = vmatprep.mubr.bf16.mxu0 0
  %1448 = vmatmul.mubr.bf16.gmra.mxu0 %v1414
  %v1449 = vpop.f32.mrf.mxu0
  %v1450 = vadd.f32 0.0, %v1449
  %v1451 = vpop.f32.mrf.mxu0
  %v1452 = vpop.f32.mrf.mxu0
  %v1453 = vadd.f32 0.0, %v1452
  %v1454 = vpop.f32.mrf.mxu0
  %1455 = vdwg.mxu0
  %v1456 = vadd.f32 %v1412, %v1450
  %v1457 = vadd.f32 %v1413, %v1453
  %v1458 = vtanh.pop %v1456
  %v1459 = vtanh.pop %v1457
  %1460 = vst [vmem:[%s1411] sm:$0xff] %v1458
  %1461 = vst [vmem:[%s1411 + $0x8] sm:$0xff] %v1459
  %s1462 = scalar_lea.vmem %s5, 80
  %v1463 = vld [vmem:[%s1462] sm:$0xff]
  %v1464 = vld [vmem:[%s1462 + $0x8] sm:$0xff]
  %v1465 = vpack.c.bf16 %v1459, %v1458
  %1466 = vmatprep.subr.bf16.mxu0 0
  %1467 = vmatpush1.bf16.msra.mxu0 %v1202
  %1468 = vmatprep.subr.bf16.mxu0 0
  %1469 = vmatpush1.bf16.msra.mxu0 %v1201
  %1470 = vmatprep.subr.bf16.mxu0 0
  %1471 = vmatpush1.bf16.msra.mxu0 %v1200
  %1472 = vmatprep.subr.bf16.mxu0 0
  %1473 = vmatpush1.bf16.msra.mxu0 %v1199
  %1474 = vmatprep.subr.bf16.mxu0 0
  %1475 = vmatpush1.bf16.msra.mxu0 %v1198
  %1476 = vmatprep.subr.bf16.mxu0 0
  %1477 = vmatpush1.bf16.msra.mxu0 %v1197
  %1478 = vmatprep.subr.bf16.mxu0 0
  %1479 = vmatpush1.bf16.msra.mxu0 %v1196
  %1480 = vmatprep.subr.bf16.mxu0 0
  %1481 = vmatpush1.bf16.msra.mxu0 %v1195
  %1482 = vmatprep.subr.bf16.mxu0 0
  %1483 = vmatpush2.bf16.msra.mxu0 0
  %1484 = vmatprep.subr.bf16.mxu0 0
  %1485 = vmatpush2.bf16.msra.mxu0 0
  %1486 = vmatprep.subr.bf16.mxu0 0
  %1487 = vmatpush2.bf16.msra.mxu0 0
  %1488 = vmatprep.subr.bf16.mxu0 0
  %1489 = vmatpush2.bf16.msra.mxu0 0
  %1490 = vmatprep.subr.bf16.mxu0 0
  %1491 = vmatpush2.bf16.msra.mxu0 0
  %1492 = vmatprep.subr.bf16.mxu0 0
  %1493 = vmatpush2.bf16.msra.mxu0 0
  %1494 = vmatprep.subr.bf16.mxu0 0
  %1495 = vmatpush2.bf16.msra.mxu0 0
  %1496 = vmatprep.subr.bf16.mxu0 0
  %1497 = vmatpush2.bf16.msra.mxu0 0
  %1498 = vmatprep.mubr.bf16.mxu0 0
  %1499 = vmatmul.mubr.bf16.gmra.mxu0 %v1465
  %v1500 = vpop.f32.mrf.mxu0
  %v1501 = vadd.f32 0.0, %v1500
  %v1502 = vpop.f32.mrf.mxu0
  %v1503 = vpop.f32.mrf.mxu0
  %v1504 = vadd.f32 0.0, %v1503
  %v1505 = vpop.f32.mrf.mxu0
  %1506 = vdwg.mxu0
  %v1507 = vadd.f32 %v1463, %v1501
  %v1508 = vadd.f32 %v1464, %v1504
  %v1509 = vtanh.pop %v1507
  %v1510 = vtanh.pop %v1508
  %1511 = vst [vmem:[%s1462] sm:$0xff] %v1509
  %1512 = vst [vmem:[%s1462 + $0x8] sm:$0xff] %v1510
  %s1513 = scalar_lea.vmem %s5, 96
  %v1514 = vld [vmem:[%s1513] sm:$0xff]
  %v1515 = vld [vmem:[%s1513 + $0x8] sm:$0xff]
  %v1516 = vpack.c.bf16 %v1510, %v1509
  %1517 = vmatprep.subr.bf16.mxu0 0
  %1518 = vmatpush1.bf16.msra.mxu0 %v1202
  %1519 = vmatprep.subr.bf16.mxu0 0
  %1520 = vmatpush1.bf16.msra.mxu0 %v1201
  %1521 = vmatprep.subr.bf16.mxu0 0
  %1522 = vmatpush1.bf16.msra.mxu0 %v1200
  %1523 = vmatprep.subr.bf16.mxu0 0
  %1524 = vmatpush1.bf16.msra.mxu0 %v1199
  %1525 = vmatprep.subr.bf16.mxu0 0
  %1526 = vmatpush1.bf16.msra.mxu0 %v1198
  %1527 = vmatprep.subr.bf16.mxu0 0
  %1528 = vmatpush1.bf16.msra.mxu0 %v1197
  %1529 = vmatprep.subr.bf16.mxu0 0
  %1530 = vmatpush1.bf16.msra.mxu0 %v1196
  %1531 = vmatprep.subr.bf16.mxu0 0
  %1532 = vmatpush1.bf16.msra.mxu0 %v1195
  %1533 = vmatprep.subr.bf16.mxu0 0
  %1534 = vmatpush2.bf16.msra.mxu0 0
  %1535 = vmatprep.subr.bf16.mxu0 0
  %1536 = vmatpush2.bf16.msra.mxu0 0
  %1537 = vmatprep.subr.bf16.mxu0 0
  %1538 = vmatpush2.bf16.msra.mxu0 0
  %1539 = vmatprep.subr.bf16.mxu0 0
  %1540 = vmatpush2.bf16.msra.mxu0 0
  %1541 = vmatprep.subr.bf16.mxu0 0
  %1542 = vmatpush2.bf16.msra.mxu0 0
  %1543 = vmatprep.subr.bf16.mxu0 0
  %1544 = vmatpush2.bf16.msra.mxu0 0
  %1545 = vmatprep.subr.bf16.mxu0 0
  %1546 = vmatpush2.bf16.msra.mxu0 0
  %1547 = vmatprep.subr.bf16.mxu0 0
  %1548 = vmatpush2.bf16.msra.mxu0 0
  %1549 = vmatprep.mubr.bf16.mxu0 0
  %1550 = vmatmul.mubr.bf16.gmra.mxu0 %v1516
  %v1551 = vpop.f32.mrf.mxu0
  %v1552 = vadd.f32 0.0, %v1551
  %v1553 = vpop.f32.mrf.mxu0
  %v1554 = vpop.f32.mrf.mxu0
  %v1555 = vadd.f32 0.0, %v1554
  %v1556 = vpop.f32.mrf.mxu0
  %1557 = vdwg.mxu0
  %v1558 = vadd.f32 %v1514, %v1552
  %v1559 = vadd.f32 %v1515, %v1555
  %v1560 = vtanh.pop %v1558
  %v1561 = vtanh.pop %v1559
  %1562 = vst [vmem:[%s1513] sm:$0xff] %v1560
  %1563 = vst [vmem:[%s1513 + $0x8] sm:$0xff] %v1561
  %s1564 = scalar_lea.vmem %s5, 112
  %v1565 = vld [vmem:[%s1564] sm:$0xff]
  %v1566 = vld [vmem:[%s1564 + $0x8] sm:$0xff]
  %v1567 = vpack.c.bf16 %v1561, %v1560
  %1568 = vmatprep.subr.bf16.mxu0 0
  %1569 = vmatpush1.bf16.msra.mxu0 %v1202
  %1570 = vmatprep.subr.bf16.mxu0 0
  %1571 = vmatpush1.bf16.msra.mxu0 %v1201
  %1572 = vmatprep.subr.bf16.mxu0 0
  %1573 = vmatpush1.bf16.msra.mxu0 %v1200
  %1574 = vmatprep.subr.bf16.mxu0 0
  %1575 = vmatpush1.bf16.msra.mxu0 %v1199
  %1576 = vmatprep.subr.bf16.mxu0 0
  %1577 = vmatpush1.bf16.msra.mxu0 %v1198
  %1578 = vmatprep.subr.bf16.mxu0 0
  %1579 = vmatpush1.bf16.msra.mxu0 %v1197
  %1580 = vmatprep.subr.bf16.mxu0 0
  %1581 = vmatpush1.bf16.msra.mxu0 %v1196
  %1582 = vmatprep.subr.bf16.mxu0 0
  %1583 = vmatpush1.bf16.msra.mxu0 %v1195
  %1584 = vmatprep.subr.bf16.mxu0 0
  %1585 = vmatpush2.bf16.msra.mxu0 0
  %1586 = vmatprep.subr.bf16.mxu0 0
  %1587 = vmatpush2.bf16.msra.mxu0 0
  %1588 = vmatprep.subr.bf16.mxu0 0
  %1589 = vmatpush2.bf16.msra.mxu0 0
  %1590 = vmatprep.subr.bf16.mxu0 0
  %1591 = vmatpush2.bf16.msra.mxu0 0
  %1592 = vmatprep.subr.bf16.mxu0 0
  %1593 = vmatpush2.bf16.msra.mxu0 0
  %1594 = vmatprep.subr.bf16.mxu0 0
  %1595 = vmatpush2.bf16.msra.mxu0 0
  %1596 = vmatprep.subr.bf16.mxu0 0
  %1597 = vmatpush2.bf16.msra.mxu0 0
  %1598 = vmatprep.subr.bf16.mxu0 0
  %1599 = vmatpush2.bf16.msra.mxu0 0
  %1600 = vmatprep.mubr.bf16.mxu0 0
  %1601 = vmatmul.mubr.bf16.gmra.mxu0 %v1567
  %v1602 = vpop.f32.mrf.mxu0
  %v1603 = vadd.f32 0.0, %v1602
  %v1604 = vpop.f32.mrf.mxu0
  %v1605 = vpop.f32.mrf.mxu0
  %v1606 = vadd.f32 0.0, %v1605
  %v1607 = vpop.f32.mrf.mxu0
  %1608 = vdwg.mxu0
  %v1609 = vadd.f32 %v1565, %v1603
  %v1610 = vadd.f32 %v1566, %v1606
  %v1611 = vtanh.pop %v1609
  %v1612 = vtanh.pop %v1610
  %1613 = vst [vmem:[%s1564] sm:$0xff] %v1611
  %1614 = vst [vmem:[%s1564 + $0x8] sm:$0xff] %v1612
  %1615 = vst [vmem:[%s1157] sm:$0xff] %v1611
  %1616 = vst [vmem:[%s1157 + $0x8] sm:$0xff] %v1612
  // Predicated region
  $region26: #{rnn_forward.1} parent=0 // pred_check
    _
  $region27: #{rnn_forward.1} parent=0 // pred_check_branch
    %1618 = sbr.rel (0) target = $region29
  $region28: #{rnn_forward.1} parent=0 // pred_region
    _
  $region29: #{rnn_forward.1} parent=0 // pred_fallthru
    _
  // Predicated region
  $region30: #{rnn_forward.1} parent=0 // pred_check
    _
  $region31: #{rnn_forward.1} parent=0 // pred_check_branch
    %1620 = sbr.rel (0) target = $region33
  $region32: #{rnn_forward.1} parent=0 // pred_region
    _
  $region33: #{rnn_forward.1} parent=0 // pred_fallthru
    _
  // Predicated region
  $region34: #{rnn_forward.1} parent=0 // pred_check
    _
  $region35: #{rnn_forward.1} parent=0 // pred_check_branch
    %1622 = sbr.rel (0) target = $region37
  $region36: #{rnn_forward.1} parent=0 // pred_region
    _
  $region37: #{rnn_forward.1} parent=0 // pred_fallthru
    _
  // Predicated region
  $region38: #{rnn_forward.1} parent=0 // pred_check
    _
  $region39: #{rnn_forward.1} parent=0 // pred_check_branch
    %1624 = sbr.rel (0) target = $region41
  $region40: #{rnn_forward.1} parent=0 // pred_region
    _
  $region41: #{rnn_forward.1} parent=0 // pred_fallthru
    _

</llo_original>
